<compile_context>
chip_gen: v5e
topology: v5e:2x2
jax: 0.10.0
libtpu: 0.0.40
codegen_flags: <defaults>
</compile_context>

<pallas_src>
import math

import jax
import jax.numpy as jnp
from jax import lax
from jax.experimental import pallas as pl
from jax.experimental.pallas import tpu as pltpu

LN_EPS = 1e-5

WEIGHT_ORDER = [
    "lin_w", "lin_b",
    "conv1_w", "conv1_b", "conv2_w", "conv2_b",
    "attn_wqkv", "attn_bqkv", "attn_wo", "attn_bo",
    "ln1_g", "ln1_b",
    "ff1_w", "ff1_b", "ff2_w", "ff2_b",
    "ln2_g", "ln2_b",
]


def _layer_norm(x, gamma, beta):
    mu = jnp.mean(x, axis=-1, keepdims=True)
    xc = x - mu
    var = jnp.mean(xc * xc, axis=-1, keepdims=True)
    return xc * lax.rsqrt(var + LN_EPS) * gamma + beta


# ------------------------------------------------------------------ kernel ---

def make_tcba_kernel(num_levels, kernel_size, nhead):
    """One grid step == one batch element: full TCN + transformer layer in VMEM."""

    def kernel(x_ref,
               wl_ref, bl_ref,
               wc1_ref, bc1_ref, wc2_ref, bc2_ref,
               wqkv_ref, bqkv_ref, wo_ref, bo_ref,
               g1_ref, be1_ref,
               w1_ref, b1_ref, w2_ref, b2_ref,
               g2_ref, be2_ref,
               o_ref):
        x = x_ref[0].astype(jnp.float32)                 # (A, T, S)
        A, T, _ = x.shape
        c_last = (((2,), (0,)), ((), ()))                # contract last dim with dim 0

        # ---------------- TemporalConvNet ----------------
        # Linear(input_size, output_size) over the state dim.
        h = lax.dot_general(x, wl_ref[...], c_last,
                            preferred_element_type=jnp.float32) + bl_ref[...]
        C = h.shape[-1]

        def causal_conv(inp, w, b, dilation):
            # w: (K, C, C), b: (1, C). out[t] = b + sum_k inp[t-(K-1-k)*d] @ w[k]
            acc = jnp.zeros((A, T, C), jnp.float32) + b
            for k in range(kernel_size):
                shift = (kernel_size - 1 - k) * dilation
                if shift >= T:
                    continue
                if shift == 0:
                    src = inp
                else:
                    src = jnp.concatenate(
                        [jnp.zeros((A, shift, C), jnp.float32), inp[:, :T - shift, :]],
                        axis=1)
                acc = acc + lax.dot_general(src, w[k], c_last,
                                            preferred_element_type=jnp.float32)
            return acc

        for lvl in range(num_levels):
            dil = 2 ** lvl
            res = h                                       # in-ch == out-ch -> identity residual
            w1c = wc1_ref[lvl]
            w2c = wc2_ref[lvl]
            h1 = jnp.maximum(causal_conv(h, w1c, bc1_ref[lvl], dil), 0.0)
            # TODO(synk): dropout / norm_layer inside the block omitted (eval identity).
            h2 = causal_conv(h1, w2c, bc2_ref[lvl], dil)
            h = jnp.maximum(h2 + res, 0.0)

        # Pre-hook: permute(2,1,0,3)[-1]  ==  keep only the last time step.
        y = h[:, T - 1, :]                                # (A, C)

        # ---------------- TransformerEncoderLayer (post-norm) ----------------
        qkv = jnp.dot(y, wqkv_ref[...],
                      preferred_element_type=jnp.float32) + bqkv_ref[...]   # (A, 3C)
        dh = C // nhead
        scale = 1.0 / math.sqrt(dh)
        contract_rows = (((1,), (1,)), ((), ()))          # q @ k^T without explicit transpose

        heads = []
        for hh in range(nhead):
            q = qkv[:, hh * dh:(hh + 1) * dh]
            k = qkv[:, C + hh * dh:C + (hh + 1) * dh]
            v = qkv[:, 2 * C + hh * dh:2 * C + (hh + 1) * dh]
            s = lax.dot_general(q, k, contract_rows,
                                preferred_element_type=jnp.float32) * scale  # (A, A)
            s = s - jnp.max(s, axis=-1, keepdims=True)
            p = jnp.exp(s)
            p = p / jnp.sum(p, axis=-1, keepdims=True)
            heads.append(jnp.dot(p, v, preferred_element_type=jnp.float32))  # (A, dh)
        ctx = jnp.concatenate(heads, axis=-1)             # (A, C)

        attn_out = jnp.dot(ctx, wo_ref[...],
                           preferred_element_type=jnp.float32) + bo_ref[...]
        # TODO(synk): attention/FFN dropout skipped (eval identity).
        src = _layer_norm(y + attn_out, g1_ref[...], be1_ref[...])

        ff = jnp.maximum(
            jnp.dot(src, w1_ref[...], preferred_element_type=jnp.float32) + b1_ref[...],
            0.0)
        ff = jnp.dot(ff, w2_ref[...], preferred_element_type=jnp.float32) + b2_ref[...]
        out = _layer_norm(src + ff, g2_ref[...], be2_ref[...])

        # Fwd-hook transpose(0,1) is achieved by writing batch-first directly.
        o_ref[0] = out.astype(o_ref.dtype)

    return kernel


# ----------------------------------------------------------------- wrapper ---

def tcba_encoder_forward(x, params, *, num_levels, kernel_size, nhead):
    """x: (B, A, T, input_size) -> (B, A, output_size)."""
    B, A, T, S = x.shape
    C = params["lin_w"].shape[1]
    assert C % nhead == 0

    kernel = make_tcba_kernel(num_levels, kernel_size, nhead)
    weights = [params[name] for name in WEIGHT_ORDER]

    def resident_spec(arr):
        nd = arr.ndim
        return pl.BlockSpec(arr.shape, lambda b, _nd=nd: (0,) * _nd)

    in_specs = [pl.BlockSpec((1, A, T, S), lambda b: (b, 0, 0, 0))]
    in_specs += [resident_spec(w) for w in weights]

    return pl.pallas_call(
        kernel,
        out_shape=jax.ShapeDtypeStruct((B, A, C), jnp.float32),
        grid_spec=pltpu.PrefetchScalarGridSpec(
            num_scalar_prefetch=0,
            grid=(B,),                                     # independent batch elements
            in_specs=in_specs,
            out_specs=pl.BlockSpec((1, A, C), lambda b: (b, 0, 0))),
        compiler_params=pltpu.CompilerParams(
            dimension_semantics=("parallel",),             # shard batch over TCs (v7x)
            vmem_limit_bytes=32 * 1024 * 1024),
    )(x, *weights)


# -------------------------------------------------------------- param init ---

def init_params(key, input_size, output_size, num_channels, kernel_size,
                nhead, dim_feedforward):
    # Spec builds channels [c0, ..., output_size]; the Linear emits output_size
    # channels, so equal-channel TCN levels are assumed here.
    assert all(c == output_size for c in num_channels)
    L = len(num_channels)
    C = output_size
    ks = jax.random.split(key, 10)

    def unif(k, shape, bound):
        return jax.random.uniform(k, shape, jnp.float32, -bound, bound)

    def lin(k, fin, fout):
        bound = 1.0 / math.sqrt(fin)
        kw, kb = jax.random.split(k)
        return unif(kw, (fin, fout), bound), unif(kb, (1, fout), bound)

    p = {}
    p["lin_w"], p["lin_b"] = lin(ks[0], input_size, C)

    cb = 1.0 / math.sqrt(C * kernel_size)
    p["conv1_w"] = unif(ks[1], (L, kernel_size, C, C), cb)   # (K, C_in, C_out) per level
    p["conv1_b"] = unif(ks[2], (L, 1, C), cb)
    p["conv2_w"] = unif(ks[3], (L, kernel_size, C, C), cb)
    p["conv2_b"] = unif(ks[4], (L, 1, C), cb)

    xav = math.sqrt(6.0 / (C + 3 * C))                       # in_proj xavier_uniform
    p["attn_wqkv"] = unif(ks[5], (C, 3 * C), xav)
    p["attn_bqkv"] = jnp.zeros((1, 3 * C), jnp.float32)
    p["attn_wo"], p["attn_bo"] = lin(ks[6], C, C)
    p["ln1_g"] = jnp.ones((1, C), jnp.float32)
    p["ln1_b"] = jnp.zeros((1, C), jnp.float32)
    p["ff1_w"], p["ff1_b"] = lin(ks[7], C, dim_feedforward)
    p["ff2_w"], p["ff2_b"] = lin(ks[8], dim_feedforward, C)
    p["ln2_g"] = jnp.ones((1, C), jnp.float32)
    p["ln2_b"] = jnp.zeros((1, C), jnp.float32)
    return p


if __name__ == "__main__":
    B, A, T = 2, 4, 8                 # batch, agents, time
    INPUT, OUTPUT = 16, 32            # input_size, output_size
    NUM_CHANNELS = [OUTPUT]           # one TemporalConvBlock level
    KERNEL_SIZE = 2
    NHEAD, DFF = 4, 64

    key = jax.random.PRNGKey(0)
    kx, kp = jax.random.split(key)
    x = jax.random.normal(kx, (B, A, T, INPUT), jnp.float32)
    params = init_params(kp, INPUT, OUTPUT, NUM_CHANNELS, KERNEL_SIZE, NHEAD, DFF)

    out = tcba_encoder_forward(x, params,
                               num_levels=len(NUM_CHANNELS),
                               kernel_size=KERNEL_SIZE,
                               nhead=NHEAD)
    jax.block_until_ready(out)

    assert out.shape == (B, A, OUTPUT)
    assert bool(jnp.all(jnp.isfinite(out)))
    print("KERNEL_OK")
</pallas_src>

<mosaic_0001>
module attributes {stable_mosaic.version = 11 : i64} {
  func.func @kernel(%arg0: i32, %arg1: memref<1x4x8x16xf32, #tpu.memory_space<vmem>>, %arg2: memref<16x32xf32, #tpu.memory_space<vmem>>, %arg3: memref<1x32xf32, #tpu.memory_space<vmem>>, %arg4: memref<1x2x32x32xf32, #tpu.memory_space<vmem>>, %arg5: memref<1x1x32xf32, #tpu.memory_space<vmem>>, %arg6: memref<1x2x32x32xf32, #tpu.memory_space<vmem>>, %arg7: memref<1x1x32xf32, #tpu.memory_space<vmem>>, %arg8: memref<32x96xf32, #tpu.memory_space<vmem>>, %arg9: memref<1x96xf32, #tpu.memory_space<vmem>>, %arg10: memref<32x32xf32, #tpu.memory_space<vmem>>, %arg11: memref<1x32xf32, #tpu.memory_space<vmem>>, %arg12: memref<1x32xf32, #tpu.memory_space<vmem>>, %arg13: memref<1x32xf32, #tpu.memory_space<vmem>>, %arg14: memref<32x64xf32, #tpu.memory_space<vmem>>, %arg15: memref<1x64xf32, #tpu.memory_space<vmem>>, %arg16: memref<64x32xf32, #tpu.memory_space<vmem>>, %arg17: memref<1x32xf32, #tpu.memory_space<vmem>>, %arg18: memref<1x32xf32, #tpu.memory_space<vmem>>, %arg19: memref<1x32xf32, #tpu.memory_space<vmem>>, %arg20: memref<1x4x32xf32, #tpu.memory_space<vmem>>) attributes {dimension_semantics = [#tpu.dimension_semantics<parallel>], iteration_bounds = array<i64: 2>, scalar_prefetch = 0 : i64, scratch_operands = 0 : i64, tpu.core_type = #tpu.core_type<tc>, window_params = [{transform_indices = @transform_0, window_bounds = array<i64: 1, 4, 8, 16>}, {pipeline_mode = #tpu.pipeline_mode<synchronous>, transform_indices = @transform_1, window_bounds = array<i64: 16, 32>}, {pipeline_mode = #tpu.pipeline_mode<synchronous>, transform_indices = @transform_2, window_bounds = array<i64: 1, 32>}, {pipeline_mode = #tpu.pipeline_mode<synchronous>, transform_indices = @transform_3, window_bounds = array<i64: 1, 2, 32, 32>}, {pipeline_mode = #tpu.pipeline_mode<synchronous>, transform_indices = @transform_4, window_bounds = array<i64: 1, 1, 32>}, {pipeline_mode = #tpu.pipeline_mode<synchronous>, transform_indices = @transform_5, window_bounds = array<i64: 1, 2, 32, 32>}, {pipeline_mode = #tpu.pipeline_mode<synchronous>, transform_indices = @transform_6, window_bounds = array<i64: 1, 1, 32>}, {pipeline_mode = #tpu.pipeline_mode<synchronous>, transform_indices = @transform_7, window_bounds = array<i64: 32, 96>}, {pipeline_mode = #tpu.pipeline_mode<synchronous>, transform_indices = @transform_8, window_bounds = array<i64: 1, 96>}, {pipeline_mode = #tpu.pipeline_mode<synchronous>, transform_indices = @transform_9, window_bounds = array<i64: 32, 32>}, {pipeline_mode = #tpu.pipeline_mode<synchronous>, transform_indices = @transform_10, window_bounds = array<i64: 1, 32>}, {pipeline_mode = #tpu.pipeline_mode<synchronous>, transform_indices = @transform_11, window_bounds = array<i64: 1, 32>}, {pipeline_mode = #tpu.pipeline_mode<synchronous>, transform_indices = @transform_12, window_bounds = array<i64: 1, 32>}, {pipeline_mode = #tpu.pipeline_mode<synchronous>, transform_indices = @transform_13, window_bounds = array<i64: 32, 64>}, {pipeline_mode = #tpu.pipeline_mode<synchronous>, transform_indices = @transform_14, window_bounds = array<i64: 1, 64>}, {pipeline_mode = #tpu.pipeline_mode<synchronous>, transform_indices = @transform_15, window_bounds = array<i64: 64, 32>}, {pipeline_mode = #tpu.pipeline_mode<synchronous>, transform_indices = @transform_16, window_bounds = array<i64: 1, 32>}, {pipeline_mode = #tpu.pipeline_mode<synchronous>, transform_indices = @transform_17, window_bounds = array<i64: 1, 32>}, {pipeline_mode = #tpu.pipeline_mode<synchronous>, transform_indices = @transform_18, window_bounds = array<i64: 1, 32>}, {transform_indices = @transform_19, window_bounds = array<i64: 1, 4, 32>}]} {
    %c0 = arith.constant 0 : index
    %c0_0 = arith.constant 0 : index
    %c0_1 = arith.constant 0 : index
    %c0_2 = arith.constant 0 : index
    %0 = vector.load %arg1[%c0, %c0_0, %c0_1, %c0_2] : memref<1x4x8x16xf32, #tpu.memory_space<vmem>>, vector<1x4x8x16xf32>
    %1 = vector.shape_cast %0 : vector<1x4x8x16xf32> to vector<4x8x16xf32>
    %c0_3 = arith.constant 0 : index
    %c0_4 = arith.constant 0 : index
    %2 = vector.load %arg2[%c0_3, %c0_4] : memref<16x32xf32, #tpu.memory_space<vmem>>, vector<16x32xf32>
    %cst = arith.constant dense<0.000000e+00> : vector<4x8x32xf32>
    %3 = tpu.matmul %1, %2, %cst {dimension_numbers = #tpu.dot_dimension_numbers<[2], [0], [0, 1], [1], [0, 0, 0, 1, 1, 1], [], []>} : vector<4x8x16xf32>, vector<16x32xf32>, vector<4x8x32xf32> -> vector<4x8x32xf32>
    %c0_5 = arith.constant 0 : index
    %c0_6 = arith.constant 0 : index
    %4 = vector.load %arg3[%c0_5, %c0_6] : memref<1x32xf32, #tpu.memory_space<vmem>>, vector<1x32xf32>
    %5 = vector.shape_cast %4 : vector<1x32xf32> to vector<1x1x32xf32>
    %6 = vector.broadcast %5 : vector<1x1x32xf32> to vector<4x8x32xf32>
    %7 = arith.addf %3, %6 : vector<4x8x32xf32>
    %c0_7 = arith.constant 0 : index
    %c0_8 = arith.constant 0 : index
    %c0_9 = arith.constant 0 : index
    %c0_10 = arith.constant 0 : index
    %8 = vector.load %arg4[%c0_7, %c0_8, %c0_9, %c0_10] : memref<1x2x32x32xf32, #tpu.memory_space<vmem>>, vector<1x2x32x32xf32>
    %9 = vector.shape_cast %8 : vector<1x2x32x32xf32> to vector<2x32x32xf32>
    %c0_11 = arith.constant 0 : index
    %c0_12 = arith.constant 0 : index
    %c0_13 = arith.constant 0 : index
    %c0_14 = arith.constant 0 : index
    %10 = vector.load %arg6[%c0_11, %c0_12, %c0_13, %c0_14] : memref<1x2x32x32xf32, #tpu.memory_space<vmem>>, vector<1x2x32x32xf32>
    %11 = vector.shape_cast %10 : vector<1x2x32x32xf32> to vector<2x32x32xf32>
    %c0_15 = arith.constant 0 : index
    %c0_16 = arith.constant 0 : index
    %c0_17 = arith.constant 0 : index
    %12 = vector.load %arg5[%c0_15, %c0_16, %c0_17] : memref<1x1x32xf32, #tpu.memory_space<vmem>>, vector<1x1x32xf32>
    %13 = vector.shape_cast %12 : vector<1x1x32xf32> to vector<1x32xf32>
    %cst_18 = arith.constant 0.000000e+00 : f32
    %14 = vector.broadcast %cst_18 : f32 to vector<4x8x32xf32>
    %15 = vector.shape_cast %13 : vector<1x32xf32> to vector<1x1x32xf32>
    %16 = vector.broadcast %15 : vector<1x1x32xf32> to vector<4x8x32xf32>
    %17 = arith.addf %14, %16 : vector<4x8x32xf32>
    %cst_19 = arith.constant 0.000000e+00 : f32
    %18 = vector.broadcast %cst_19 : f32 to vector<4x1x32xf32>
    %19 = vector.extract_strided_slice %7 {offsets = [0, 0, 0], sizes = [4, 7, 32], strides = [1, 1, 1]} : vector<4x8x32xf32> to vector<4x7x32xf32>
    %20 = tpu.concatenate %18, %19 in 1 : vector<4x1x32xf32>, vector<4x7x32xf32> -> vector<4x8x32xf32>
    %21 = vector.extract_strided_slice %9 {offsets = [0, 0, 0], sizes = [1, 32, 32], strides = [1, 1, 1]} : vector<2x32x32xf32> to vector<1x32x32xf32>
    %22 = vector.shape_cast %21 : vector<1x32x32xf32> to vector<32x32xf32>
    %cst_20 = arith.constant dense<0.000000e+00> : vector<4x8x32xf32>
    %23 = tpu.matmul %20, %22, %cst_20 {dimension_numbers = #tpu.dot_dimension_numbers<[2], [0], [0, 1], [1], [0, 0, 0, 1, 1, 1], [], []>} : vector<4x8x32xf32>, vector<32x32xf32>, vector<4x8x32xf32> -> vector<4x8x32xf32>
    %24 = arith.addf %17, %23 : vector<4x8x32xf32>
    %25 = vector.extract_strided_slice %9 {offsets = [1, 0, 0], sizes = [1, 32, 32], strides = [1, 1, 1]} : vector<2x32x32xf32> to vector<1x32x32xf32>
    %26 = vector.shape_cast %25 : vector<1x32x32xf32> to vector<32x32xf32>
    %cst_21 = arith.constant dense<0.000000e+00> : vector<4x8x32xf32>
    %27 = tpu.matmul %7, %26, %cst_21 {dimension_numbers = #tpu.dot_dimension_numbers<[2], [0], [0, 1], [1], [0, 0, 0, 1, 1, 1], [], []>} : vector<4x8x32xf32>, vector<32x32xf32>, vector<4x8x32xf32> -> vector<4x8x32xf32>
    %28 = arith.addf %24, %27 : vector<4x8x32xf32>
    %cst_22 = arith.constant 0.000000e+00 : f32
    %29 = vector.broadcast %cst_22 : f32 to vector<4x8x32xf32>
    %30 = arith.maximumf %28, %29 : vector<4x8x32xf32>
    %c0_23 = arith.constant 0 : index
    %c0_24 = arith.constant 0 : index
    %c0_25 = arith.constant 0 : index
    %31 = vector.load %arg7[%c0_23, %c0_24, %c0_25] : memref<1x1x32xf32, #tpu.memory_space<vmem>>, vector<1x1x32xf32>
    %32 = vector.shape_cast %31 : vector<1x1x32xf32> to vector<1x32xf32>
    %cst_26 = arith.constant 0.000000e+00 : f32
    %33 = vector.broadcast %cst_26 : f32 to vector<4x8x32xf32>
    %34 = vector.shape_cast %32 : vector<1x32xf32> to vector<1x1x32xf32>
    %35 = vector.broadcast %34 : vector<1x1x32xf32> to vector<4x8x32xf32>
    %36 = arith.addf %33, %35 : vector<4x8x32xf32>
    %cst_27 = arith.constant 0.000000e+00 : f32
    %37 = vector.broadcast %cst_27 : f32 to vector<4x1x32xf32>
    %38 = vector.extract_strided_slice %30 {offsets = [0, 0, 0], sizes = [4, 7, 32], strides = [1, 1, 1]} : vector<4x8x32xf32> to vector<4x7x32xf32>
    %39 = tpu.concatenate %37, %38 in 1 : vector<4x1x32xf32>, vector<4x7x32xf32> -> vector<4x8x32xf32>
    %40 = vector.extract_strided_slice %11 {offsets = [0, 0, 0], sizes = [1, 32, 32], strides = [1, 1, 1]} : vector<2x32x32xf32> to vector<1x32x32xf32>
    %41 = vector.shape_cast %40 : vector<1x32x32xf32> to vector<32x32xf32>
    %cst_28 = arith.constant dense<0.000000e+00> : vector<4x8x32xf32>
    %42 = tpu.matmul %39, %41, %cst_28 {dimension_numbers = #tpu.dot_dimension_numbers<[2], [0], [0, 1], [1], [0, 0, 0, 1, 1, 1], [], []>} : vector<4x8x32xf32>, vector<32x32xf32>, vector<4x8x32xf32> -> vector<4x8x32xf32>
    %43 = arith.addf %36, %42 : vector<4x8x32xf32>
    %44 = vector.extract_strided_slice %11 {offsets = [1, 0, 0], sizes = [1, 32, 32], strides = [1, 1, 1]} : vector<2x32x32xf32> to vector<1x32x32xf32>
    %45 = vector.shape_cast %44 : vector<1x32x32xf32> to vector<32x32xf32>
    %cst_29 = arith.constant dense<0.000000e+00> : vector<4x8x32xf32>
    %46 = tpu.matmul %30, %45, %cst_29 {dimension_numbers = #tpu.dot_dimension_numbers<[2], [0], [0, 1], [1], [0, 0, 0, 1, 1, 1], [], []>} : vector<4x8x32xf32>, vector<32x32xf32>, vector<4x8x32xf32> -> vector<4x8x32xf32>
    %47 = arith.addf %43, %46 : vector<4x8x32xf32>
    %48 = arith.addf %47, %7 : vector<4x8x32xf32>
    %cst_30 = arith.constant 0.000000e+00 : f32
    %49 = vector.broadcast %cst_30 : f32 to vector<4x8x32xf32>
    %50 = arith.maximumf %48, %49 : vector<4x8x32xf32>
    %51 = vector.extract_strided_slice %50 {offsets = [0, 7, 0], sizes = [4, 1, 32], strides = [1, 1, 1]} : vector<4x8x32xf32> to vector<4x1x32xf32>
    %52 = vector.shape_cast %51 : vector<4x1x32xf32> to vector<4x32xf32>
    %c0_31 = arith.constant 0 : index
    %c0_32 = arith.constant 0 : index
    %53 = vector.load %arg8[%c0_31, %c0_32] : memref<32x96xf32, #tpu.memory_space<vmem>>, vector<32x96xf32>
    %cst_33 = arith.constant dense<0.000000e+00> : vector<4x96xf32>
    %54 = tpu.matmul %52, %53, %cst_33 {dimension_numbers = #tpu.dot_dimension_numbers<[1], [0], [0], [1], [0, 0, 1, 1], [], []>} : vector<4x32xf32>, vector<32x96xf32>, vector<4x96xf32> -> vector<4x96xf32>
    %c0_34 = arith.constant 0 : index
    %c0_35 = arith.constant 0 : index
    %55 = vector.load %arg9[%c0_34, %c0_35] : memref<1x96xf32, #tpu.memory_space<vmem>>, vector<1x96xf32>
    %56 = vector.broadcast %55 : vector<1x96xf32> to vector<4x96xf32>
    %57 = arith.addf %54, %56 : vector<4x96xf32>
    %58 = vector.extract_strided_slice %57 {offsets = [0, 0], sizes = [4, 8], strides = [1, 1]} : vector<4x96xf32> to vector<4x8xf32>
    %59 = vector.extract_strided_slice %57 {offsets = [0, 32], sizes = [4, 8], strides = [1, 1]} : vector<4x96xf32> to vector<4x8xf32>
    %60 = vector.extract_strided_slice %57 {offsets = [0, 64], sizes = [4, 8], strides = [1, 1]} : vector<4x96xf32> to vector<4x8xf32>
    %cst_36 = arith.constant dense<0.000000e+00> : vector<4x4xf32>
    %61 = tpu.matmul %58, %59, %cst_36 {dimension_numbers = #tpu.dot_dimension_numbers<[1], [1], [0], [0], [0, 0, 1, 0], [], []>} : vector<4x8xf32>, vector<4x8xf32>, vector<4x4xf32> -> vector<4x4xf32>
    %cst_37 = arith.constant 0.353553385 : f32
    %62 = vector.broadcast %cst_37 : f32 to vector<4x4xf32>
    %63 = arith.mulf %61, %62 : vector<4x4xf32>
    %cst_38 = arith.constant dense<0xFF800000> : vector<4xf32>
    %64 = vector.multi_reduction <maximumf>, %63, %cst_38 [1] : vector<4x4xf32> to vector<4xf32>
    %65 = vector.shape_cast %64 : vector<4xf32> to vector<4x1xf32>
    %66 = vector.broadcast %65 : vector<4x1xf32> to vector<4x4xf32>
    %67 = arith.subf %63, %66 : vector<4x4xf32>
    %68 = math.exp %67 : vector<4x4xf32>
    %cst_39 = arith.constant dense<0.000000e+00> : vector<4xf32>
    %69 = vector.multi_reduction <add>, %68, %cst_39 [1] : vector<4x4xf32> to vector<4xf32>
    %70 = vector.shape_cast %69 : vector<4xf32> to vector<4x1xf32>
    %71 = vector.broadcast %70 : vector<4x1xf32> to vector<4x4xf32>
    %72 = arith.divf %68, %71 : vector<4x4xf32>
    %cst_40 = arith.constant dense<0.000000e+00> : vector<4x8xf32>
    %73 = tpu.matmul %72, %60, %cst_40 {dimension_numbers = #tpu.dot_dimension_numbers<[1], [0], [0], [1], [0, 0, 1, 1], [], []>} : vector<4x4xf32>, vector<4x8xf32>, vector<4x8xf32> -> vector<4x8xf32>
    %74 = vector.extract_strided_slice %57 {offsets = [0, 8], sizes = [4, 8], strides = [1, 1]} : vector<4x96xf32> to vector<4x8xf32>
    %75 = vector.extract_strided_slice %57 {offsets = [0, 40], sizes = [4, 8], strides = [1, 1]} : vector<4x96xf32> to vector<4x8xf32>
    %76 = vector.extract_strided_slice %57 {offsets = [0, 72], sizes = [4, 8], strides = [1, 1]} : vector<4x96xf32> to vector<4x8xf32>
    %cst_41 = arith.constant dense<0.000000e+00> : vector<4x4xf32>
    %77 = tpu.matmul %74, %75, %cst_41 {dimension_numbers = #tpu.dot_dimension_numbers<[1], [1], [0], [0], [0, 0, 1, 0], [], []>} : vector<4x8xf32>, vector<4x8xf32>, vector<4x4xf32> -> vector<4x4xf32>
    %cst_42 = arith.constant 0.353553385 : f32
    %78 = vector.broadcast %cst_42 : f32 to vector<4x4xf32>
    %79 = arith.mulf %77, %78 : vector<4x4xf32>
    %cst_43 = arith.constant dense<0xFF800000> : vector<4xf32>
    %80 = vector.multi_reduction <maximumf>, %79, %cst_43 [1] : vector<4x4xf32> to vector<4xf32>
    %81 = vector.shape_cast %80 : vector<4xf32> to vector<4x1xf32>
    %82 = vector.broadcast %81 : vector<4x1xf32> to vector<4x4xf32>
    %83 = arith.subf %79, %82 : vector<4x4xf32>
    %84 = math.exp %83 : vector<4x4xf32>
    %cst_44 = arith.constant dense<0.000000e+00> : vector<4xf32>
    %85 = vector.multi_reduction <add>, %84, %cst_44 [1] : vector<4x4xf32> to vector<4xf32>
    %86 = vector.shape_cast %85 : vector<4xf32> to vector<4x1xf32>
    %87 = vector.broadcast %86 : vector<4x1xf32> to vector<4x4xf32>
    %88 = arith.divf %84, %87 : vector<4x4xf32>
    %cst_45 = arith.constant dense<0.000000e+00> : vector<4x8xf32>
    %89 = tpu.matmul %88, %76, %cst_45 {dimension_numbers = #tpu.dot_dimension_numbers<[1], [0], [0], [1], [0, 0, 1, 1], [], []>} : vector<4x4xf32>, vector<4x8xf32>, vector<4x8xf32> -> vector<4x8xf32>
    %90 = vector.extract_strided_slice %57 {offsets = [0, 16], sizes = [4, 8], strides = [1, 1]} : vector<4x96xf32> to vector<4x8xf32>
    %91 = vector.extract_strided_slice %57 {offsets = [0, 48], sizes = [4, 8], strides = [1, 1]} : vector<4x96xf32> to vector<4x8xf32>
    %92 = vector.extract_strided_slice %57 {offsets = [0, 80], sizes = [4, 8], strides = [1, 1]} : vector<4x96xf32> to vector<4x8xf32>
    %cst_46 = arith.constant dense<0.000000e+00> : vector<4x4xf32>
    %93 = tpu.matmul %90, %91, %cst_46 {dimension_numbers = #tpu.dot_dimension_numbers<[1], [1], [0], [0], [0, 0, 1, 0], [], []>} : vector<4x8xf32>, vector<4x8xf32>, vector<4x4xf32> -> vector<4x4xf32>
    %cst_47 = arith.constant 0.353553385 : f32
    %94 = vector.broadcast %cst_47 : f32 to vector<4x4xf32>
    %95 = arith.mulf %93, %94 : vector<4x4xf32>
    %cst_48 = arith.constant dense<0xFF800000> : vector<4xf32>
    %96 = vector.multi_reduction <maximumf>, %95, %cst_48 [1] : vector<4x4xf32> to vector<4xf32>
    %97 = vector.shape_cast %96 : vector<4xf32> to vector<4x1xf32>
    %98 = vector.broadcast %97 : vector<4x1xf32> to vector<4x4xf32>
    %99 = arith.subf %95, %98 : vector<4x4xf32>
    %100 = math.exp %99 : vector<4x4xf32>
    %cst_49 = arith.constant dense<0.000000e+00> : vector<4xf32>
    %101 = vector.multi_reduction <add>, %100, %cst_49 [1] : vector<4x4xf32> to vector<4xf32>
    %102 = vector.shape_cast %101 : vector<4xf32> to vector<4x1xf32>
    %103 = vector.broadcast %102 : vector<4x1xf32> to vector<4x4xf32>
    %104 = arith.divf %100, %103 : vector<4x4xf32>
    %cst_50 = arith.constant dense<0.000000e+00> : vector<4x8xf32>
    %105 = tpu.matmul %104, %92, %cst_50 {dimension_numbers = #tpu.dot_dimension_numbers<[1], [0], [0], [1], [0, 0, 1, 1], [], []>} : vector<4x4xf32>, vector<4x8xf32>, vector<4x8xf32> -> vector<4x8xf32>
    %106 = vector.extract_strided_slice %57 {offsets = [0, 24], sizes = [4, 8], strides = [1, 1]} : vector<4x96xf32> to vector<4x8xf32>
    %107 = vector.extract_strided_slice %57 {offsets = [0, 56], sizes = [4, 8], strides = [1, 1]} : vector<4x96xf32> to vector<4x8xf32>
    %108 = vector.extract_strided_slice %57 {offsets = [0, 88], sizes = [4, 8], strides = [1, 1]} : vector<4x96xf32> to vector<4x8xf32>
    %cst_51 = arith.constant dense<0.000000e+00> : vector<4x4xf32>
    %109 = tpu.matmul %106, %107, %cst_51 {dimension_numbers = #tpu.dot_dimension_numbers<[1], [1], [0], [0], [0, 0, 1, 0], [], []>} : vector<4x8xf32>, vector<4x8xf32>, vector<4x4xf32> -> vector<4x4xf32>
    %cst_52 = arith.constant 0.353553385 : f32
    %110 = vector.broadcast %cst_52 : f32 to vector<4x4xf32>
    %111 = arith.mulf %109, %110 : vector<4x4xf32>
    %cst_53 = arith.constant dense<0xFF800000> : vector<4xf32>
    %112 = vector.multi_reduction <maximumf>, %111, %cst_53 [1] : vector<4x4xf32> to vector<4xf32>
    %113 = vector.shape_cast %112 : vector<4xf32> to vector<4x1xf32>
    %114 = vector.broadcast %113 : vector<4x1xf32> to vector<4x4xf32>
    %115 = arith.subf %111, %114 : vector<4x4xf32>
    %116 = math.exp %115 : vector<4x4xf32>
    %cst_54 = arith.constant dense<0.000000e+00> : vector<4xf32>
    %117 = vector.multi_reduction <add>, %116, %cst_54 [1] : vector<4x4xf32> to vector<4xf32>
    %118 = vector.shape_cast %117 : vector<4xf32> to vector<4x1xf32>
    %119 = vector.broadcast %118 : vector<4x1xf32> to vector<4x4xf32>
    %120 = arith.divf %116, %119 : vector<4x4xf32>
    %cst_55 = arith.constant dense<0.000000e+00> : vector<4x8xf32>
    %121 = tpu.matmul %120, %108, %cst_55 {dimension_numbers = #tpu.dot_dimension_numbers<[1], [0], [0], [1], [0, 0, 1, 1], [], []>} : vector<4x4xf32>, vector<4x8xf32>, vector<4x8xf32> -> vector<4x8xf32>
    %122 = tpu.concatenate %73, %89, %105, %121 in 1 : vector<4x8xf32>, vector<4x8xf32>, vector<4x8xf32>, vector<4x8xf32> -> vector<4x32xf32>
    %c0_56 = arith.constant 0 : index
    %c0_57 = arith.constant 0 : index
    %123 = vector.load %arg10[%c0_56, %c0_57] : memref<32x32xf32, #tpu.memory_space<vmem>>, vector<32x32xf32>
    %cst_58 = arith.constant dense<0.000000e+00> : vector<4x32xf32>
    %124 = tpu.matmul %122, %123, %cst_58 {dimension_numbers = #tpu.dot_dimension_numbers<[1], [0], [0], [1], [0, 0, 1, 1], [], []>} : vector<4x32xf32>, vector<32x32xf32>, vector<4x32xf32> -> vector<4x32xf32>
    %c0_59 = arith.constant 0 : index
    %c0_60 = arith.constant 0 : index
    %125 = vector.load %arg11[%c0_59, %c0_60] : memref<1x32xf32, #tpu.memory_space<vmem>>, vector<1x32xf32>
    %126 = vector.broadcast %125 : vector<1x32xf32> to vector<4x32xf32>
    %127 = arith.addf %124, %126 : vector<4x32xf32>
    %128 = arith.addf %52, %127 : vector<4x32xf32>
    %c0_61 = arith.constant 0 : index
    %c0_62 = arith.constant 0 : index
    %129 = vector.load %arg12[%c0_61, %c0_62] : memref<1x32xf32, #tpu.memory_space<vmem>>, vector<1x32xf32>
    %c0_63 = arith.constant 0 : index
    %c0_64 = arith.constant 0 : index
    %130 = vector.load %arg13[%c0_63, %c0_64] : memref<1x32xf32, #tpu.memory_space<vmem>>, vector<1x32xf32>
    %cst_65 = arith.constant dense<0.000000e+00> : vector<4xf32>
    %131 = vector.multi_reduction <add>, %128, %cst_65 [1] : vector<4x32xf32> to vector<4xf32>
    %132 = vector.shape_cast %131 : vector<4xf32> to vector<4x1xf32>
    %cst_66 = arith.constant 3.200000e+01 : f32
    %133 = vector.broadcast %cst_66 : f32 to vector<4x1xf32>
    %134 = arith.divf %132, %133 : vector<4x1xf32>
    %135 = vector.broadcast %134 : vector<4x1xf32> to vector<4x32xf32>
    %136 = arith.subf %128, %135 : vector<4x32xf32>
    %137 = arith.mulf %136, %136 : vector<4x32xf32>
    %cst_67 = arith.constant dense<0.000000e+00> : vector<4xf32>
    %138 = vector.multi_reduction <add>, %137, %cst_67 [1] : vector<4x32xf32> to vector<4xf32>
    %139 = vector.shape_cast %138 : vector<4xf32> to vector<4x1xf32>
    %cst_68 = arith.constant 3.200000e+01 : f32
    %140 = vector.broadcast %cst_68 : f32 to vector<4x1xf32>
    %141 = arith.divf %139, %140 : vector<4x1xf32>
    %cst_69 = arith.constant 9.99999974E-6 : f32
    %142 = vector.broadcast %cst_69 : f32 to vector<4x1xf32>
    %143 = arith.addf %141, %142 : vector<4x1xf32>
    %144 = math.rsqrt %143 : vector<4x1xf32>
    %145 = vector.broadcast %144 : vector<4x1xf32> to vector<4x32xf32>
    %146 = arith.mulf %136, %145 : vector<4x32xf32>
    %147 = vector.broadcast %129 : vector<1x32xf32> to vector<4x32xf32>
    %148 = arith.mulf %146, %147 : vector<4x32xf32>
    %149 = vector.broadcast %130 : vector<1x32xf32> to vector<4x32xf32>
    %150 = arith.addf %148, %149 : vector<4x32xf32>
    %c0_70 = arith.constant 0 : index
    %c0_71 = arith.constant 0 : index
    %151 = vector.load %arg14[%c0_70, %c0_71] : memref<32x64xf32, #tpu.memory_space<vmem>>, vector<32x64xf32>
    %cst_72 = arith.constant dense<0.000000e+00> : vector<4x64xf32>
    %152 = tpu.matmul %150, %151, %cst_72 {dimension_numbers = #tpu.dot_dimension_numbers<[1], [0], [0], [1], [0, 0, 1, 1], [], []>} : vector<4x32xf32>, vector<32x64xf32>, vector<4x64xf32> -> vector<4x64xf32>
    %c0_73 = arith.constant 0 : index
    %c0_74 = arith.constant 0 : index
    %153 = vector.load %arg15[%c0_73, %c0_74] : memref<1x64xf32, #tpu.memory_space<vmem>>, vector<1x64xf32>
    %154 = vector.broadcast %153 : vector<1x64xf32> to vector<4x64xf32>
    %155 = arith.addf %152, %154 : vector<4x64xf32>
    %cst_75 = arith.constant 0.000000e+00 : f32
    %156 = vector.broadcast %cst_75 : f32 to vector<4x64xf32>
    %157 = arith.maximumf %155, %156 : vector<4x64xf32>
    %c0_76 = arith.constant 0 : index
    %c0_77 = arith.constant 0 : index
    %158 = vector.load %arg16[%c0_76, %c0_77] : memref<64x32xf32, #tpu.memory_space<vmem>>, vector<64x32xf32>
    %cst_78 = arith.constant dense<0.000000e+00> : vector<4x32xf32>
    %159 = tpu.matmul %157, %158, %cst_78 {dimension_numbers = #tpu.dot_dimension_numbers<[1], [0], [0], [1], [0, 0, 1, 1], [], []>} : vector<4x64xf32>, vector<64x32xf32>, vector<4x32xf32> -> vector<4x32xf32>
    %c0_79 = arith.constant 0 : index
    %c0_80 = arith.constant 0 : index
    %160 = vector.load %arg17[%c0_79, %c0_80] : memref<1x32xf32, #tpu.memory_space<vmem>>, vector<1x32xf32>
    %161 = vector.broadcast %160 : vector<1x32xf32> to vector<4x32xf32>
    %162 = arith.addf %159, %161 : vector<4x32xf32>
    %163 = arith.addf %150, %162 : vector<4x32xf32>
    %c0_81 = arith.constant 0 : index
    %c0_82 = arith.constant 0 : index
    %164 = vector.load %arg18[%c0_81, %c0_82] : memref<1x32xf32, #tpu.memory_space<vmem>>, vector<1x32xf32>
    %c0_83 = arith.constant 0 : index
    %c0_84 = arith.constant 0 : index
    %165 = vector.load %arg19[%c0_83, %c0_84] : memref<1x32xf32, #tpu.memory_space<vmem>>, vector<1x32xf32>
    %cst_85 = arith.constant dense<0.000000e+00> : vector<4xf32>
    %166 = vector.multi_reduction <add>, %163, %cst_85 [1] : vector<4x32xf32> to vector<4xf32>
    %167 = vector.shape_cast %166 : vector<4xf32> to vector<4x1xf32>
    %cst_86 = arith.constant 3.200000e+01 : f32
    %168 = vector.broadcast %cst_86 : f32 to vector<4x1xf32>
    %169 = arith.divf %167, %168 : vector<4x1xf32>
    %170 = vector.broadcast %169 : vector<4x1xf32> to vector<4x32xf32>
    %171 = arith.subf %163, %170 : vector<4x32xf32>
    %172 = arith.mulf %171, %171 : vector<4x32xf32>
    %cst_87 = arith.constant dense<0.000000e+00> : vector<4xf32>
    %173 = vector.multi_reduction <add>, %172, %cst_87 [1] : vector<4x32xf32> to vector<4xf32>
    %174 = vector.shape_cast %173 : vector<4xf32> to vector<4x1xf32>
    %cst_88 = arith.constant 3.200000e+01 : f32
    %175 = vector.broadcast %cst_88 : f32 to vector<4x1xf32>
    %176 = arith.divf %174, %175 : vector<4x1xf32>
    %cst_89 = arith.constant 9.99999974E-6 : f32
    %177 = vector.broadcast %cst_89 : f32 to vector<4x1xf32>
    %178 = arith.addf %176, %177 : vector<4x1xf32>
    %179 = math.rsqrt %178 : vector<4x1xf32>
    %180 = vector.broadcast %179 : vector<4x1xf32> to vector<4x32xf32>
    %181 = arith.mulf %171, %180 : vector<4x32xf32>
    %182 = vector.broadcast %164 : vector<1x32xf32> to vector<4x32xf32>
    %183 = arith.mulf %181, %182 : vector<4x32xf32>
    %184 = vector.broadcast %165 : vector<1x32xf32> to vector<4x32xf32>
    %185 = arith.addf %183, %184 : vector<4x32xf32>
    %c0_90 = arith.constant 0 : index
    %c0_91 = arith.constant 0 : index
    %c0_92 = arith.constant 0 : index
    %186 = vector.load %arg20[%c0_90, %c0_91, %c0_92] : memref<1x4x32xf32, #tpu.memory_space<vmem>>, vector<1x4x32xf32>
    %187 = vector.shape_cast %186 : vector<1x4x32xf32> to vector<4x32xf32>
    %188 = vector.shape_cast %185 : vector<4x32xf32> to vector<1x4x32xf32>
    tpu.vector_store %arg20[%c0_90, %c0_91, %c0_92], %188 {strides = array<i32>} : memref<1x4x32xf32, #tpu.memory_space<vmem>>, vector<1x4x32xf32>,
    return
  }
  func.func @transform_0(%arg0: i32) -> (i32, i32, i32, i32) {
    %c0_i32 = arith.constant 0 : i32
    %c0_i32_0 = arith.constant 0 : i32
    %c0_i32_1 = arith.constant 0 : i32
    %c0_i32_2 = arith.constant 0 : i32
    return %arg0, %c0_i32, %c0_i32_0, %c0_i32_1 : i32, i32, i32, i32
  }
  func.func @transform_1(%arg0: i32) -> (i32, i32) {
    %c0_i32 = arith.constant 0 : i32
    %c0_i32_0 = arith.constant 0 : i32
    %c0_i32_1 = arith.constant 0 : i32
    return %c0_i32, %c0_i32_0 : i32, i32
  }
  func.func @transform_2(%arg0: i32) -> (i32, i32) {
    %c0_i32 = arith.constant 0 : i32
    %c0_i32_0 = arith.constant 0 : i32
    %c0_i32_1 = arith.constant 0 : i32
    return %c0_i32, %c0_i32_0 : i32, i32
  }
  func.func @transform_3(%arg0: i32) -> (i32, i32, i32, i32) {
    %c0_i32 = arith.constant 0 : i32
    %c0_i32_0 = arith.constant 0 : i32
    %c0_i32_1 = arith.constant 0 : i32
    %c0_i32_2 = arith.constant 0 : i32
    %c0_i32_3 = arith.constant 0 : i32
    return %c0_i32, %c0_i32_0, %c0_i32_1, %c0_i32_2 : i32, i32, i32, i32
  }
  func.func @transform_4(%arg0: i32) -> (i32, i32, i32) {
    %c0_i32 = arith.constant 0 : i32
    %c0_i32_0 = arith.constant 0 : i32
    %c0_i32_1 = arith.constant 0 : i32
    %c0_i32_2 = arith.constant 0 : i32
    return %c0_i32, %c0_i32_0, %c0_i32_1 : i32, i32, i32
  }
  func.func @transform_5(%arg0: i32) -> (i32, i32, i32, i32) {
    %c0_i32 = arith.constant 0 : i32
    %c0_i32_0 = arith.constant 0 : i32
    %c0_i32_1 = arith.constant 0 : i32
    %c0_i32_2 = arith.constant 0 : i32
    %c0_i32_3 = arith.constant 0 : i32
    return %c0_i32, %c0_i32_0, %c0_i32_1, %c0_i32_2 : i32, i32, i32, i32
  }
  func.func @transform_6(%arg0: i32) -> (i32, i32, i32) {
    %c0_i32 = arith.constant 0 : i32
    %c0_i32_0 = arith.constant 0 : i32
    %c0_i32_1 = arith.constant 0 : i32
    %c0_i32_2 = arith.constant 0 : i32
    return %c0_i32, %c0_i32_0, %c0_i32_1 : i32, i32, i32
  }
  func.func @transform_7(%arg0: i32) -> (i32, i32) {
    %c0_i32 = arith.constant 0 : i32
    %c0_i32_0 = arith.constant 0 : i32
    %c0_i32_1 = arith.constant 0 : i32
    return %c0_i32, %c0_i32_0 : i32, i32
  }
  func.func @transform_8(%arg0: i32) -> (i32, i32) {
    %c0_i32 = arith.constant 0 : i32
    %c0_i32_0 = arith.constant 0 : i32
    %c0_i32_1 = arith.constant 0 : i32
    return %c0_i32, %c0_i32_0 : i32, i32
  }
  func.func @transform_9(%arg0: i32) -> (i32, i32) {
    %c0_i32 = arith.constant 0 : i32
    %c0_i32_0 = arith.constant 0 : i32
    %c0_i32_1 = arith.constant 0 : i32
    return %c0_i32, %c0_i32_0 : i32, i32
  }
  func.func @transform_10(%arg0: i32) -> (i32, i32) {
    %c0_i32 = arith.constant 0 : i32
    %c0_i32_0 = arith.constant 0 : i32
    %c0_i32_1 = arith.constant 0 : i32
    return %c0_i32, %c0_i32_0 : i32, i32
  }
  func.func @transform_11(%arg0: i32) -> (i32, i32) {
    %c0_i32 = arith.constant 0 : i32
    %c0_i32_0 = arith.constant 0 : i32
    %c0_i32_1 = arith.constant 0 : i32
    return %c0_i32, %c0_i32_0 : i32, i32
  }
  func.func @transform_12(%arg0: i32) -> (i32, i32) {
    %c0_i32 = arith.constant 0 : i32
    %c0_i32_0 = arith.constant 0 : i32
    %c0_i32_1 = arith.constant 0 : i32
    return %c0_i32, %c0_i32_0 : i32, i32
  }
  func.func @transform_13(%arg0: i32) -> (i32, i32) {
    %c0_i32 = arith.constant 0 : i32
    %c0_i32_0 = arith.constant 0 : i32
    %c0_i32_1 = arith.constant 0 : i32
    return %c0_i32, %c0_i32_0 : i32, i32
  }
  func.func @transform_14(%arg0: i32) -> (i32, i32) {
    %c0_i32 = arith.constant 0 : i32
    %c0_i32_0 = arith.constant 0 : i32
    %c0_i32_1 = arith.constant 0 : i32
    return %c0_i32, %c0_i32_0 : i32, i32
  }
  func.func @transform_15(%arg0: i32) -> (i32, i32) {
    %c0_i32 = arith.constant 0 : i32
    %c0_i32_0 = arith.constant 0 : i32
    %c0_i32_1 = arith.constant 0 : i32
    return %c0_i32, %c0_i32_0 : i32, i32
  }
  func.func @transform_16(%arg0: i32) -> (i32, i32) {
    %c0_i32 = arith.constant 0 : i32
    %c0_i32_0 = arith.constant 0 : i32
    %c0_i32_1 = arith.constant 0 : i32
    return %c0_i32, %c0_i32_0 : i32, i32
  }
  func.func @transform_17(%arg0: i32) -> (i32, i32) {
    %c0_i32 = arith.constant 0 : i32
    %c0_i32_0 = arith.constant 0 : i32
    %c0_i32_1 = arith.constant 0 : i32
    return %c0_i32, %c0_i32_0 : i32, i32
  }
  func.func @transform_18(%arg0: i32) -> (i32, i32) {
    %c0_i32 = arith.constant 0 : i32
    %c0_i32_0 = arith.constant 0 : i32
    %c0_i32_1 = arith.constant 0 : i32
    return %c0_i32, %c0_i32_0 : i32, i32
  }
  func.func @transform_19(%arg0: i32) -> (i32, i32, i32) {
    %c0_i32 = arith.constant 0 : i32
    %c0_i32_0 = arith.constant 0 : i32
    %c0_i32_1 = arith.constant 0 : i32
    return %arg0, %c0_i32, %c0_i32_0 : i32, i32, i32
  }
}

</mosaic_0001>

<llo_original>
// kernel: tpu_custom_call.1
$region0: #{tpu_custom_call.1}
  #allocation0 [shape = 'u32[]', space=smem, size = 0x4, offset = 0x4, fixed_abs, tag = 'smem constant byte address 0x4 - core index']
  #allocation1 [shape = 'u32[72,128]{1,0:T(1,128)}', space=vmem, size = 0x9000, scoped, tag = 'internal scratch']
  %s0 = inlined_call_operand.vmem [shape: f32[2,4,8,16], index: 0, kind: input, shape index: {}]
  %s1 = inlined_call_operand.hbm [shape: f32[16,32], index: 1, kind: input, shape index: {}]
  %s2 = inlined_call_operand.vmem [shape: f32[1,32], index: 2, kind: input, shape index: {}]
  %s3 = inlined_call_operand.hbm [shape: f32[1,2,32,32], index: 3, kind: input, shape index: {}]
  %s4 = inlined_call_operand.vmem [shape: f32[1,1,32], index: 4, kind: input, shape index: {}]
  %s5 = inlined_call_operand.hbm [shape: f32[1,2,32,32], index: 5, kind: input, shape index: {}]
  %s6 = inlined_call_operand.vmem [shape: f32[1,1,32], index: 6, kind: input, shape index: {}]
  %s7 = inlined_call_operand.vmem [shape: f32[32,96], index: 7, kind: input, shape index: {}]
  %s8 = inlined_call_operand.vmem [shape: f32[1,96], index: 8, kind: input, shape index: {}]
  %s9 = inlined_call_operand.hbm [shape: f32[32,32], index: 9, kind: input, shape index: {}]
  %s10 = inlined_call_operand.vmem [shape: f32[1,32], index: 10, kind: input, shape index: {}]
  %s11 = inlined_call_operand.vmem [shape: f32[1,32], index: 11, kind: input, shape index: {}]
  %s12 = inlined_call_operand.vmem [shape: f32[1,32], index: 12, kind: input, shape index: {}]
  %s13 = inlined_call_operand.hbm [shape: f32[32,64], index: 13, kind: input, shape index: {}]
  %s14 = inlined_call_operand.vmem [shape: f32[1,64], index: 14, kind: input, shape index: {}]
  %s15 = inlined_call_operand.vmem [shape: f32[64,32], index: 15, kind: input, shape index: {}]
  %s16 = inlined_call_operand.vmem [shape: f32[1,32], index: 16, kind: input, shape index: {}]
  %s17 = inlined_call_operand.vmem [shape: f32[1,32], index: 17, kind: input, shape index: {}]
  %s18 = inlined_call_operand.vmem [shape: f32[1,32], index: 18, kind: input, shape index: {}]
  %s19 = inlined_call_operand.hbm [shape: f32[2,4,32], index: 19, kind: output, shape index: {}]
  %s20 = sld [smem:[#allocation0]]
  $region129: #{tpu_custom_call.1} parent=0
    _
  %s22 = ssub.s32 1, %s20
  %s23 = scalar_select 0, %s22, %s20
  $region1: #{tpu_custom_call.1} parent=0
    #allocation2 [shape = 'u8[8192]{0}', space=vmem, size = 0x2000, scoped, tag = 'input window, operand 1, single buffered']
    #allocation3 [shape = 's32[2]{0}', space=sflag, size = 0x8, scoped, tag = 'scoped memory for tpu_custom_call.1']
    #allocation4 [shape = 's32[2]{0}', space=sflag, size = 0x8, scoped, tag = 'scoped memory for tpu_custom_call.1']
    #allocation5 [shape = 'u8[32768]{0}', space=vmem, size = 0x8000, scoped, tag = 'input window, operand 3, single buffered']
    #allocation6 [shape = 's32[1]{0}', space=sflag, size = 0x4, scoped, tag = 'scoped memory for tpu_custom_call.1']
    #allocation7 [shape = 'u8[32768]{0}', space=vmem, size = 0x8000, scoped, tag = 'input window, operand 5, single buffered']
    #allocation8 [shape = 'u8[16384]{0}', space=vmem, size = 0x4000, scoped, tag = 'input window, operand 9, single buffered']
    #allocation9 [shape = 's32[1]{0}', space=sflag, size = 0x4, scoped, tag = 'scoped memory for tpu_custom_call.1']
    #allocation10 [shape = 'u8[16384]{0}', space=vmem, size = 0x4000, scoped, tag = 'input window, operand 13, single buffered']
    #allocation11 [shape = 'u8[4096]{0}', space=vmem, size = 0x1000, scoped, tag = 'output window, operand 0']
    %24 = vsyncpa [#allocation3], 0
    %25 = vsyncpa [#allocation6], 0
    %26 = vsyncpa [#allocation9], 0
    %27 = vsyncpa [#allocation4], 0
    %s28 = scalar_lea.sflag [#allocation4], 1
    %29 = vsyncpa %s28, 0
    loop: start=0, step=1, limit=4
    $region2: #{tpu_custom_call.1} parent=1 // loop_pre_header
      _
    $region3: #{tpu_custom_call.1} parent=1 // loop_header
      %s31 = sphi 0, %s35
      %p32 = scmp.ge.s32.totalorder %s31, 4
      %s41 = sphi 0, %s43
      %s44 = sphi 0, %s41
      %s45 = sphi 0, %s44
      %s61 = sphi 0, %s45
      %s65 = sphi 0, %s65
      %s67 = sphi 0, %s65
      %s68 = sphi 0, %s67
      %s82 = sphi 0, %s68
      %s86 = sphi 0, %s86
      %s88 = sphi 0, %s86
      %s89 = sphi 0, %s88
      %s103 = sphi 0, %s89
      %s107 = sphi 0, %s107
      %s109 = sphi 0, %s107
      %s110 = sphi 0, %s109
      %s124 = sphi 0, %s110
      %s128 = sphi 0, %s128
      %s130 = sphi 0, %s128
      %s131 = sphi 0, %s130
      %s145 = sphi 0, %s131
      %s149 = sphi 0, %s149
      %s151 = sphi 0, %s149
      %s152 = sphi 0, %s151
      %s166 = sphi 0, %s152
      %s170 = sphi 0, %s170
      %s172 = sphi 0, %s170
      %s173 = sphi 0, %s172
      %s187 = sphi 0, %s173
      %s191 = sphi 0, %s191
      %s193 = sphi 0, %s191
      %s194 = sphi 0, %s193
      %s208 = sphi 0, %s194
      %s212 = sphi 0, %s212
      %s214 = sphi 0, %s212
      %s215 = sphi 0, %s214
      %s229 = sphi 0, %s215
      %s233 = sphi 0, %s233
      %s235 = sphi 0, %s233
      %s236 = sphi 0, %s235
      %s250 = sphi 0, %s236
      %s254 = sphi 0, %s254
      %s256 = sphi 0, %s254
      %s257 = sphi 0, %s256
      %s271 = sphi 0, %s257
      %s275 = sphi 0, %s275
      %s277 = sphi 0, %s275
      %s278 = sphi 0, %s277
      %s292 = sphi 0, %s278
      %s296 = sphi 0, %s296
      %s298 = sphi 0, %s296
      %s299 = sphi 0, %s298
      %s313 = sphi 0, %s299
      %s317 = sphi 0, %s317
      %s319 = sphi 0, %s317
      %s320 = sphi 0, %s319
      %s334 = sphi 0, %s320
      %s338 = sphi 0, %s338
      %s340 = sphi 0, %s338
      %s341 = sphi 0, %s340
      %s355 = sphi 0, %s341
      %s359 = sphi 0, %s359
      %s361 = sphi 0, %s359
      %s362 = sphi 0, %s361
      %s376 = sphi 0, %s362
      %s380 = sphi 0, %s380
      %s382 = sphi 0, %s380
      %s383 = sphi 0, %s382
      %s397 = sphi 0, %s383
      %s401 = sphi 0, %s401
      %s403 = sphi 0, %s401
      %s404 = sphi 0, %s403
      %s418 = sphi 0, %s404
      %s422 = sphi 0, %s422
      %s424 = sphi 0, %s422
      %s425 = sphi 0, %s424
      %s439 = sphi 0, %s425
      %s445 = sphi 0, %s447
      %s448 = sphi 0, %s445
      %s449 = sphi 0, %s448
      %s465 = sphi 0, %s449
    $region4: #{tpu_custom_call.1} parent=1 // loop_header_branch
      %34 = sbr.rel (%p32) target = $region8
    $region5: #{tpu_custom_call.1} parent=1 // loop_body
      %s36 = ssub.s32 %s31, 1
      %s37 = ssub.s32 %s31, 2
      %s38 = sadd.s32 %s31, 1
      %s39 = ssub.s32 %s31, %s38
      %p40 = scmp.eq.s32.totalorder %s39, 0
      %s42 = sadd.s32 %s41, 1
      %s43 = scalar_select %p40, %s41, %s42
      %p46 = pneg %p40
      %p47 = scmp.eq.s32.totalorder %s31, 1
      %p48 = por %p46, %p47
      %p49 = scmp.ne.s32.totalorder %s41, %s44
      %p50 = scmp.eq.s32.totalorder %s31, 0
      %p51 = por %p49, %p50
      %p52 = scmp.ne.s32.totalorder %s41, %s44
      %p53 = scmp.eq.s32.totalorder %s36, 1
      %p54 = por %p52, %p53
      %p55 = scmp.ne.s32.totalorder %s44, %s45
      %p56 = scmp.eq.s32.totalorder %s36, 0
      %p57 = por %p55, %p56
      %p58 = scmp.ne.s32.totalorder %s44, %s45
      %p59 = scmp.eq.s32.totalorder %s37, 1
      %p60 = por %p58, %p59
      %p62 = scmp.ne.s32.totalorder %s45, %s61
      %p63 = scmp.eq.s32.totalorder %s37, 0
      %p64 = por %p62, %p63
      %s66 = sadd.s32 %s65, 1
      %p69 = scmp.eq.s32.totalorder %s31, 1
      %p70 = scmp.ne.s32.totalorder %s65, %s67
      %p71 = scmp.eq.s32.totalorder %s31, 0
      %p72 = por %p70, %p71
      %p73 = scmp.ne.s32.totalorder %s65, %s67
      %p74 = scmp.eq.s32.totalorder %s36, 1
      %p75 = por %p73, %p74
      %p76 = scmp.ne.s32.totalorder %s67, %s68
      %p77 = scmp.eq.s32.totalorder %s36, 0
      %p78 = por %p76, %p77
      %p79 = scmp.ne.s32.totalorder %s67, %s68
      %p80 = scmp.eq.s32.totalorder %s37, 1
      %p81 = por %p79, %p80
      %p83 = scmp.ne.s32.totalorder %s68, %s82
      %p84 = scmp.eq.s32.totalorder %s37, 0
      %p85 = por %p83, %p84
      %s87 = sadd.s32 %s86, 1
      %p90 = scmp.eq.s32.totalorder %s31, 1
      %p91 = scmp.ne.s32.totalorder %s86, %s88
      %p92 = scmp.eq.s32.totalorder %s31, 0
      %p93 = por %p91, %p92
      %p94 = scmp.ne.s32.totalorder %s86, %s88
      %p95 = scmp.eq.s32.totalorder %s36, 1
      %p96 = por %p94, %p95
      %p97 = scmp.ne.s32.totalorder %s88, %s89
      %p98 = scmp.eq.s32.totalorder %s36, 0
      %p99 = por %p97, %p98
      %p100 = scmp.ne.s32.totalorder %s88, %s89
      %p101 = scmp.eq.s32.totalorder %s37, 1
      %p102 = por %p100, %p101
      %p104 = scmp.ne.s32.totalorder %s89, %s103
      %p105 = scmp.eq.s32.totalorder %s37, 0
      %p106 = por %p104, %p105
      %s108 = sadd.s32 %s107, 1
      %p111 = scmp.eq.s32.totalorder %s31, 1
      %p112 = scmp.ne.s32.totalorder %s107, %s109
      %p113 = scmp.eq.s32.totalorder %s31, 0
      %p114 = por %p112, %p113
      %p115 = scmp.ne.s32.totalorder %s107, %s109
      %p116 = scmp.eq.s32.totalorder %s36, 1
      %p117 = por %p115, %p116
      %p118 = scmp.ne.s32.totalorder %s109, %s110
      %p119 = scmp.eq.s32.totalorder %s36, 0
      %p120 = por %p118, %p119
      %p121 = scmp.ne.s32.totalorder %s109, %s110
      %p122 = scmp.eq.s32.totalorder %s37, 1
      %p123 = por %p121, %p122
      %p125 = scmp.ne.s32.totalorder %s110, %s124
      %p126 = scmp.eq.s32.totalorder %s37, 0
      %p127 = por %p125, %p126
      %s129 = sadd.s32 %s128, 1
      %p132 = scmp.eq.s32.totalorder %s31, 1
      %p133 = scmp.ne.s32.totalorder %s128, %s130
      %p134 = scmp.eq.s32.totalorder %s31, 0
      %p135 = por %p133, %p134
      %p136 = scmp.ne.s32.totalorder %s128, %s130
      %p137 = scmp.eq.s32.totalorder %s36, 1
      %p138 = por %p136, %p137
      %p139 = scmp.ne.s32.totalorder %s130, %s131
      %p140 = scmp.eq.s32.totalorder %s36, 0
      %p141 = por %p139, %p140
      %p142 = scmp.ne.s32.totalorder %s130, %s131
      %p143 = scmp.eq.s32.totalorder %s37, 1
      %p144 = por %p142, %p143
      %p146 = scmp.ne.s32.totalorder %s131, %s145
      %p147 = scmp.eq.s32.totalorder %s37, 0
      %p148 = por %p146, %p147
      %s150 = sadd.s32 %s149, 1
      %p153 = scmp.eq.s32.totalorder %s31, 1
      %p154 = scmp.ne.s32.totalorder %s149, %s151
      %p155 = scmp.eq.s32.totalorder %s31, 0
      %p156 = por %p154, %p155
      %p157 = scmp.ne.s32.totalorder %s149, %s151
      %p158 = scmp.eq.s32.totalorder %s36, 1
      %p159 = por %p157, %p158
      %p160 = scmp.ne.s32.totalorder %s151, %s152
      %p161 = scmp.eq.s32.totalorder %s36, 0
      %p162 = por %p160, %p161
      %p163 = scmp.ne.s32.totalorder %s151, %s152
      %p164 = scmp.eq.s32.totalorder %s37, 1
      %p165 = por %p163, %p164
      %p167 = scmp.ne.s32.totalorder %s152, %s166
      %p168 = scmp.eq.s32.totalorder %s37, 0
      %p169 = por %p167, %p168
      %s171 = sadd.s32 %s170, 1
      %p174 = scmp.eq.s32.totalorder %s31, 1
      %p175 = scmp.ne.s32.totalorder %s170, %s172
      %p176 = scmp.eq.s32.totalorder %s31, 0
      %p177 = por %p175, %p176
      %p178 = scmp.ne.s32.totalorder %s170, %s172
      %p179 = scmp.eq.s32.totalorder %s36, 1
      %p180 = por %p178, %p179
      %p181 = scmp.ne.s32.totalorder %s172, %s173
      %p182 = scmp.eq.s32.totalorder %s36, 0
      %p183 = por %p181, %p182
      %p184 = scmp.ne.s32.totalorder %s172, %s173
      %p185 = scmp.eq.s32.totalorder %s37, 1
      %p186 = por %p184, %p185
      %p188 = scmp.ne.s32.totalorder %s173, %s187
      %p189 = scmp.eq.s32.totalorder %s37, 0
      %p190 = por %p188, %p189
      %s192 = sadd.s32 %s191, 1
      %p195 = scmp.eq.s32.totalorder %s31, 1
      %p196 = scmp.ne.s32.totalorder %s191, %s193
      %p197 = scmp.eq.s32.totalorder %s31, 0
      %p198 = por %p196, %p197
      %p199 = scmp.ne.s32.totalorder %s191, %s193
      %p200 = scmp.eq.s32.totalorder %s36, 1
      %p201 = por %p199, %p200
      %p202 = scmp.ne.s32.totalorder %s193, %s194
      %p203 = scmp.eq.s32.totalorder %s36, 0
      %p204 = por %p202, %p203
      %p205 = scmp.ne.s32.totalorder %s193, %s194
      %p206 = scmp.eq.s32.totalorder %s37, 1
      %p207 = por %p205, %p206
      %p209 = scmp.ne.s32.totalorder %s194, %s208
      %p210 = scmp.eq.s32.totalorder %s37, 0
      %p211 = por %p209, %p210
      %s213 = sadd.s32 %s212, 1
      %p216 = scmp.eq.s32.totalorder %s31, 1
      %p217 = scmp.ne.s32.totalorder %s212, %s214
      %p218 = scmp.eq.s32.totalorder %s31, 0
      %p219 = por %p217, %p218
      %p220 = scmp.ne.s32.totalorder %s212, %s214
      %p221 = scmp.eq.s32.totalorder %s36, 1
      %p222 = por %p220, %p221
      %p223 = scmp.ne.s32.totalorder %s214, %s215
      %p224 = scmp.eq.s32.totalorder %s36, 0
      %p225 = por %p223, %p224
      %p226 = scmp.ne.s32.totalorder %s214, %s215
      %p227 = scmp.eq.s32.totalorder %s37, 1
      %p228 = por %p226, %p227
      %p230 = scmp.ne.s32.totalorder %s215, %s229
      %p231 = scmp.eq.s32.totalorder %s37, 0
      %p232 = por %p230, %p231
      %s234 = sadd.s32 %s233, 1
      %p237 = scmp.eq.s32.totalorder %s31, 1
      %p238 = scmp.ne.s32.totalorder %s233, %s235
      %p239 = scmp.eq.s32.totalorder %s31, 0
      %p240 = por %p238, %p239
      %p241 = scmp.ne.s32.totalorder %s233, %s235
      %p242 = scmp.eq.s32.totalorder %s36, 1
      %p243 = por %p241, %p242
      %p244 = scmp.ne.s32.totalorder %s235, %s236
      %p245 = scmp.eq.s32.totalorder %s36, 0
      %p246 = por %p244, %p245
      %p247 = scmp.ne.s32.totalorder %s235, %s236
      %p248 = scmp.eq.s32.totalorder %s37, 1
      %p249 = por %p247, %p248
      %p251 = scmp.ne.s32.totalorder %s236, %s250
      %p252 = scmp.eq.s32.totalorder %s37, 0
      %p253 = por %p251, %p252
      %s255 = sadd.s32 %s254, 1
      %p258 = scmp.eq.s32.totalorder %s31, 1
      %p259 = scmp.ne.s32.totalorder %s254, %s256
      %p260 = scmp.eq.s32.totalorder %s31, 0
      %p261 = por %p259, %p260
      %p262 = scmp.ne.s32.totalorder %s254, %s256
      %p263 = scmp.eq.s32.totalorder %s36, 1
      %p264 = por %p262, %p263
      %p265 = scmp.ne.s32.totalorder %s256, %s257
      %p266 = scmp.eq.s32.totalorder %s36, 0
      %p267 = por %p265, %p266
      %p268 = scmp.ne.s32.totalorder %s256, %s257
      %p269 = scmp.eq.s32.totalorder %s37, 1
      %p270 = por %p268, %p269
      %p272 = scmp.ne.s32.totalorder %s257, %s271
      %p273 = scmp.eq.s32.totalorder %s37, 0
      %p274 = por %p272, %p273
      %s276 = sadd.s32 %s275, 1
      %p279 = scmp.eq.s32.totalorder %s31, 1
      %p280 = scmp.ne.s32.totalorder %s275, %s277
      %p281 = scmp.eq.s32.totalorder %s31, 0
      %p282 = por %p280, %p281
      %p283 = scmp.ne.s32.totalorder %s275, %s277
      %p284 = scmp.eq.s32.totalorder %s36, 1
      %p285 = por %p283, %p284
      %p286 = scmp.ne.s32.totalorder %s277, %s278
      %p287 = scmp.eq.s32.totalorder %s36, 0
      %p288 = por %p286, %p287
      %p289 = scmp.ne.s32.totalorder %s277, %s278
      %p290 = scmp.eq.s32.totalorder %s37, 1
      %p291 = por %p289, %p290
      %p293 = scmp.ne.s32.totalorder %s278, %s292
      %p294 = scmp.eq.s32.totalorder %s37, 0
      %p295 = por %p293, %p294
      %s297 = sadd.s32 %s296, 1
      %p300 = scmp.eq.s32.totalorder %s31, 1
      %p301 = scmp.ne.s32.totalorder %s296, %s298
      %p302 = scmp.eq.s32.totalorder %s31, 0
      %p303 = por %p301, %p302
      %p304 = scmp.ne.s32.totalorder %s296, %s298
      %p305 = scmp.eq.s32.totalorder %s36, 1
      %p306 = por %p304, %p305
      %p307 = scmp.ne.s32.totalorder %s298, %s299
      %p308 = scmp.eq.s32.totalorder %s36, 0
      %p309 = por %p307, %p308
      %p310 = scmp.ne.s32.totalorder %s298, %s299
      %p311 = scmp.eq.s32.totalorder %s37, 1
      %p312 = por %p310, %p311
      %p314 = scmp.ne.s32.totalorder %s299, %s313
      %p315 = scmp.eq.s32.totalorder %s37, 0
      %p316 = por %p314, %p315
      %s318 = sadd.s32 %s317, 1
      %p321 = scmp.eq.s32.totalorder %s31, 1
      %p322 = scmp.ne.s32.totalorder %s317, %s319
      %p323 = scmp.eq.s32.totalorder %s31, 0
      %p324 = por %p322, %p323
      %p325 = scmp.ne.s32.totalorder %s317, %s319
      %p326 = scmp.eq.s32.totalorder %s36, 1
      %p327 = por %p325, %p326
      %p328 = scmp.ne.s32.totalorder %s319, %s320
      %p329 = scmp.eq.s32.totalorder %s36, 0
      %p330 = por %p328, %p329
      %p331 = scmp.ne.s32.totalorder %s319, %s320
      %p332 = scmp.eq.s32.totalorder %s37, 1
      %p333 = por %p331, %p332
      %p335 = scmp.ne.s32.totalorder %s320, %s334
      %p336 = scmp.eq.s32.totalorder %s37, 0
      %p337 = por %p335, %p336
      %s339 = sadd.s32 %s338, 1
      %p342 = scmp.eq.s32.totalorder %s31, 1
      %p343 = scmp.ne.s32.totalorder %s338, %s340
      %p344 = scmp.eq.s32.totalorder %s31, 0
      %p345 = por %p343, %p344
      %p346 = scmp.ne.s32.totalorder %s338, %s340
      %p347 = scmp.eq.s32.totalorder %s36, 1
      %p348 = por %p346, %p347
      %p349 = scmp.ne.s32.totalorder %s340, %s341
      %p350 = scmp.eq.s32.totalorder %s36, 0
      %p351 = por %p349, %p350
      %p352 = scmp.ne.s32.totalorder %s340, %s341
      %p353 = scmp.eq.s32.totalorder %s37, 1
      %p354 = por %p352, %p353
      %p356 = scmp.ne.s32.totalorder %s341, %s355
      %p357 = scmp.eq.s32.totalorder %s37, 0
      %p358 = por %p356, %p357
      %s360 = sadd.s32 %s359, 1
      %p363 = scmp.eq.s32.totalorder %s31, 1
      %p364 = scmp.ne.s32.totalorder %s359, %s361
      %p365 = scmp.eq.s32.totalorder %s31, 0
      %p366 = por %p364, %p365
      %p367 = scmp.ne.s32.totalorder %s359, %s361
      %p368 = scmp.eq.s32.totalorder %s36, 1
      %p369 = por %p367, %p368
      %p370 = scmp.ne.s32.totalorder %s361, %s362
      %p371 = scmp.eq.s32.totalorder %s36, 0
      %p372 = por %p370, %p371
      %p373 = scmp.ne.s32.totalorder %s361, %s362
      %p374 = scmp.eq.s32.totalorder %s37, 1
      %p375 = por %p373, %p374
      %p377 = scmp.ne.s32.totalorder %s362, %s376
      %p378 = scmp.eq.s32.totalorder %s37, 0
      %p379 = por %p377, %p378
      %s381 = sadd.s32 %s380, 1
      %p384 = scmp.eq.s32.totalorder %s31, 1
      %p385 = scmp.ne.s32.totalorder %s380, %s382
      %p386 = scmp.eq.s32.totalorder %s31, 0
      %p387 = por %p385, %p386
      %p388 = scmp.ne.s32.totalorder %s380, %s382
      %p389 = scmp.eq.s32.totalorder %s36, 1
      %p390 = por %p388, %p389
      %p391 = scmp.ne.s32.totalorder %s382, %s383
      %p392 = scmp.eq.s32.totalorder %s36, 0
      %p393 = por %p391, %p392
      %p394 = scmp.ne.s32.totalorder %s382, %s383
      %p395 = scmp.eq.s32.totalorder %s37, 1
      %p396 = por %p394, %p395
      %p398 = scmp.ne.s32.totalorder %s383, %s397
      %p399 = scmp.eq.s32.totalorder %s37, 0
      %p400 = por %p398, %p399
      %s402 = sadd.s32 %s401, 1
      %p405 = scmp.eq.s32.totalorder %s31, 1
      %p406 = scmp.ne.s32.totalorder %s401, %s403
      %p407 = scmp.eq.s32.totalorder %s31, 0
      %p408 = por %p406, %p407
      %p409 = scmp.ne.s32.totalorder %s401, %s403
      %p410 = scmp.eq.s32.totalorder %s36, 1
      %p411 = por %p409, %p410
      %p412 = scmp.ne.s32.totalorder %s403, %s404
      %p413 = scmp.eq.s32.totalorder %s36, 0
      %p414 = por %p412, %p413
      %p415 = scmp.ne.s32.totalorder %s403, %s404
      %p416 = scmp.eq.s32.totalorder %s37, 1
      %p417 = por %p415, %p416
      %p419 = scmp.ne.s32.totalorder %s404, %s418
      %p420 = scmp.eq.s32.totalorder %s37, 0
      %p421 = por %p419, %p420
      %s423 = sadd.s32 %s422, 1
      %p426 = scmp.eq.s32.totalorder %s31, 1
      %p427 = scmp.ne.s32.totalorder %s422, %s424
      %p428 = scmp.eq.s32.totalorder %s31, 0
      %p429 = por %p427, %p428
      %p430 = scmp.ne.s32.totalorder %s422, %s424
      %p431 = scmp.eq.s32.totalorder %s36, 1
      %p432 = por %p430, %p431
      %p433 = scmp.ne.s32.totalorder %s424, %s425
      %p434 = scmp.eq.s32.totalorder %s36, 0
      %p435 = por %p433, %p434
      %p436 = scmp.ne.s32.totalorder %s424, %s425
      %p437 = scmp.eq.s32.totalorder %s37, 1
      %p438 = por %p436, %p437
      %p440 = scmp.ne.s32.totalorder %s425, %s439
      %p441 = scmp.eq.s32.totalorder %s37, 0
      %p442 = por %p440, %p441
      %s443 = ssub.s32 %s31, %s38
      %p444 = scmp.eq.s32.totalorder %s443, 0
      %s446 = sadd.s32 %s445, 1
      %s447 = scalar_select %p444, %s445, %s446
      %p450 = pneg %p444
      %p451 = scmp.eq.s32.totalorder %s31, 1
      %p452 = por %p450, %p451
      %p453 = scmp.ne.s32.totalorder %s445, %s448
      %p454 = scmp.eq.s32.totalorder %s31, 0
      %p455 = por %p453, %p454
      %p456 = scmp.ne.s32.totalorder %s445, %s448
      %p457 = scmp.eq.s32.totalorder %s36, 1
      %p458 = por %p456, %p457
      %p459 = scmp.ne.s32.totalorder %s448, %s449
      %p460 = scmp.eq.s32.totalorder %s36, 0
      %p461 = por %p459, %p460
      %p462 = scmp.ne.s32.totalorder %s448, %s449
      %p463 = scmp.eq.s32.totalorder %s37, 1
      %p464 = por %p462, %p463
      %p466 = scmp.ne.s32.totalorder %s449, %s465
      %p467 = scmp.eq.s32.totalorder %s37, 0
      %p468 = por %p466, %p467
      %p469 = scmp.le.s32.totalorder 1, %s31
      %p470 = scmp.lt.s32.totalorder %s31, 3
      %p471 = pnand %p469, %p470
      %p472 = pneg %p471
      // Predicated region
      $region9: #{tpu_custom_call.1} parent=5 // pred_check
        _
      $region10: #{tpu_custom_call.1} parent=5 // pred_check_branch
        %474 = sbr.rel (%p471) target = $region12
      $region11: #{tpu_custom_call.1} parent=5 // pred_region
        %s475 = ssub.s32 %s31, 1
        // Predicated region
        $region13: #{tpu_custom_call.1} parent=11 // pred_check
          %p476 = pneg %p78
        $region14: #{tpu_custom_call.1} parent=11 // pred_check_branch
          %478 = sbr.rel (%p476) target = $region16
        $region15: #{tpu_custom_call.1} parent=11 // pred_region
          %480 = vsyncadd [#allocation3], 0
          %s481 = sshll.u32 %s1, 4
          %s482 = int_to_ptr.hbm [resolvable:$true] %s481
          %s483 = sshll.u32 [#allocation2], 4
          %s484 = int_to_ptr.vmem [resolvable:$true] %s483
          %489 = dma.hbm_to_vmem [thread:$0]  %s482, 256, %s484, [#allocation3], 128, 128, 8
        $region16: #{tpu_custom_call.1} parent=11 // pred_fallthru
          _
        // Predicated region
        $region17: #{tpu_custom_call.1} parent=11 // pred_check
          %p490 = pneg %p99
        $region18: #{tpu_custom_call.1} parent=11 // pred_check_branch
          %492 = sbr.rel (%p490) target = $region20
        $region19: #{tpu_custom_call.1} parent=11 // pred_region
          _
        $region20: #{tpu_custom_call.1} parent=11 // pred_fallthru
          _
        // Predicated region
        $region21: #{tpu_custom_call.1} parent=11 // pred_check
          %p493 = pneg %p120
        $region22: #{tpu_custom_call.1} parent=11 // pred_check_branch
          %495 = sbr.rel (%p493) target = $region24
        $region23: #{tpu_custom_call.1} parent=11 // pred_region
          %497 = vsyncadd [#allocation6], 0
          %s498 = sshll.u32 %s3, 4
          %s499 = int_to_ptr.hbm [resolvable:$true] %s498
          %s500 = sshll.u32 [#allocation5], 4
          %s501 = int_to_ptr.vmem [resolvable:$true] %s500
          %506 = dma.hbm_to_vmem [thread:$0]  %s499, 1024, %s501, [#allocation6], 128, 128, 8
        $region24: #{tpu_custom_call.1} parent=11 // pred_fallthru
          _
        // Predicated region
        $region25: #{tpu_custom_call.1} parent=11 // pred_check
          %p507 = pneg %p141
        $region26: #{tpu_custom_call.1} parent=11 // pred_check_branch
          %509 = sbr.rel (%p507) target = $region28
        $region27: #{tpu_custom_call.1} parent=11 // pred_region
          _
        $region28: #{tpu_custom_call.1} parent=11 // pred_fallthru
          _
        // Predicated region
        $region29: #{tpu_custom_call.1} parent=11 // pred_check
          %p510 = pneg %p162
        $region30: #{tpu_custom_call.1} parent=11 // pred_check_branch
          %512 = sbr.rel (%p510) target = $region32
        $region31: #{tpu_custom_call.1} parent=11 // pred_region
          %514 = vsyncadd [#allocation6], 0
          %s515 = sshll.u32 %s5, 4
          %s516 = int_to_ptr.hbm [resolvable:$true] %s515
          %s517 = sshll.u32 [#allocation7], 4
          %s518 = int_to_ptr.vmem [resolvable:$true] %s517
          %523 = dma.hbm_to_vmem [thread:$0]  %s516, 1024, %s518, [#allocation6], 128, 128, 8
        $region32: #{tpu_custom_call.1} parent=11 // pred_fallthru
          _
        // Predicated region
        $region33: #{tpu_custom_call.1} parent=11 // pred_check
          %p524 = pneg %p183
        $region34: #{tpu_custom_call.1} parent=11 // pred_check_branch
          %526 = sbr.rel (%p524) target = $region36
        $region35: #{tpu_custom_call.1} parent=11 // pred_region
          _
        $region36: #{tpu_custom_call.1} parent=11 // pred_fallthru
          _
        // Predicated region
        $region37: #{tpu_custom_call.1} parent=11 // pred_check
          %p527 = pneg %p204
        $region38: #{tpu_custom_call.1} parent=11 // pred_check_branch
          %529 = sbr.rel (%p527) target = $region40
        $region39: #{tpu_custom_call.1} parent=11 // pred_region
          _
        $region40: #{tpu_custom_call.1} parent=11 // pred_fallthru
          _
        // Predicated region
        $region41: #{tpu_custom_call.1} parent=11 // pred_check
          %p530 = pneg %p225
        $region42: #{tpu_custom_call.1} parent=11 // pred_check_branch
          %532 = sbr.rel (%p530) target = $region44
        $region43: #{tpu_custom_call.1} parent=11 // pred_region
          _
        $region44: #{tpu_custom_call.1} parent=11 // pred_fallthru
          _
        // Predicated region
        $region45: #{tpu_custom_call.1} parent=11 // pred_check
          %p533 = pneg %p246
        $region46: #{tpu_custom_call.1} parent=11 // pred_check_branch
          %535 = sbr.rel (%p533) target = $region48
        $region47: #{tpu_custom_call.1} parent=11 // pred_region
          %537 = vsyncadd [#allocation9], 0
          %s538 = sshll.u32 %s9, 4
          %s539 = int_to_ptr.hbm [resolvable:$true] %s538
          %s540 = sshll.u32 [#allocation8], 4
          %s541 = int_to_ptr.vmem [resolvable:$true] %s540
          %546 = dma.hbm_to_vmem [thread:$0]  %s539, 512, %s541, [#allocation9], 128, 128, 8
        $region48: #{tpu_custom_call.1} parent=11 // pred_fallthru
          _
        // Predicated region
        $region49: #{tpu_custom_call.1} parent=11 // pred_check
          %p547 = pneg %p267
        $region50: #{tpu_custom_call.1} parent=11 // pred_check_branch
          %549 = sbr.rel (%p547) target = $region52
        $region51: #{tpu_custom_call.1} parent=11 // pred_region
          _
        $region52: #{tpu_custom_call.1} parent=11 // pred_fallthru
          _
        // Predicated region
        $region53: #{tpu_custom_call.1} parent=11 // pred_check
          %p550 = pneg %p288
        $region54: #{tpu_custom_call.1} parent=11 // pred_check_branch
          %552 = sbr.rel (%p550) target = $region56
        $region55: #{tpu_custom_call.1} parent=11 // pred_region
          _
        $region56: #{tpu_custom_call.1} parent=11 // pred_fallthru
          _
        // Predicated region
        $region57: #{tpu_custom_call.1} parent=11 // pred_check
          %p553 = pneg %p309
        $region58: #{tpu_custom_call.1} parent=11 // pred_check_branch
          %555 = sbr.rel (%p553) target = $region60
        $region59: #{tpu_custom_call.1} parent=11 // pred_region
          _
        $region60: #{tpu_custom_call.1} parent=11 // pred_fallthru
          _
        // Predicated region
        $region61: #{tpu_custom_call.1} parent=11 // pred_check
          %p556 = pneg %p330
        $region62: #{tpu_custom_call.1} parent=11 // pred_check_branch
          %558 = sbr.rel (%p556) target = $region64
        $region63: #{tpu_custom_call.1} parent=11 // pred_region
          %560 = vsyncadd [#allocation9], 0
          %s561 = sshll.u32 %s13, 4
          %s562 = int_to_ptr.hbm [resolvable:$true] %s561
          %s563 = sshll.u32 [#allocation10], 4
          %s564 = int_to_ptr.vmem [resolvable:$true] %s563
          %569 = dma.hbm_to_vmem [thread:$0]  %s562, 512, %s564, [#allocation9], 128, 128, 8
        $region64: #{tpu_custom_call.1} parent=11 // pred_fallthru
          _
        // Predicated region
        $region65: #{tpu_custom_call.1} parent=11 // pred_check
          %p570 = pneg %p351
        $region66: #{tpu_custom_call.1} parent=11 // pred_check_branch
          %572 = sbr.rel (%p570) target = $region68
        $region67: #{tpu_custom_call.1} parent=11 // pred_region
          _
        $region68: #{tpu_custom_call.1} parent=11 // pred_fallthru
          _
        // Predicated region
        $region69: #{tpu_custom_call.1} parent=11 // pred_check
          %p573 = pneg %p372
        $region70: #{tpu_custom_call.1} parent=11 // pred_check_branch
          %575 = sbr.rel (%p573) target = $region72
        $region71: #{tpu_custom_call.1} parent=11 // pred_region
          _
        $region72: #{tpu_custom_call.1} parent=11 // pred_fallthru
          _
        // Predicated region
        $region73: #{tpu_custom_call.1} parent=11 // pred_check
          %p576 = pneg %p393
        $region74: #{tpu_custom_call.1} parent=11 // pred_check_branch
          %578 = sbr.rel (%p576) target = $region76
        $region75: #{tpu_custom_call.1} parent=11 // pred_region
          _
        $region76: #{tpu_custom_call.1} parent=11 // pred_fallthru
          _
        // Predicated region
        $region77: #{tpu_custom_call.1} parent=11 // pred_check
          %p579 = pneg %p414
        $region78: #{tpu_custom_call.1} parent=11 // pred_check_branch
          %581 = sbr.rel (%p579) target = $region80
        $region79: #{tpu_custom_call.1} parent=11 // pred_region
          _
        $region80: #{tpu_custom_call.1} parent=11 // pred_fallthru
          _
        // Predicated region
        $region81: #{tpu_custom_call.1} parent=11 // pred_check
          %p582 = pneg %p435
        $region82: #{tpu_custom_call.1} parent=11 // pred_check_branch
          %584 = sbr.rel (%p582) target = $region84
        $region83: #{tpu_custom_call.1} parent=11 // pred_region
          _
        $region84: #{tpu_custom_call.1} parent=11 // pred_fallthru
          _
      $region12: #{tpu_custom_call.1} parent=5 // pred_fallthru
        _
      %p585 = scmp.lt.s32.totalorder %s31, 2
      // Predicated region
      $region85: #{tpu_custom_call.1} parent=5 // pred_check
        %p586 = pneg %p585
      $region86: #{tpu_custom_call.1} parent=5 // pred_check_branch
        %588 = sbr.rel (%p586) target = $region88
      $region87: #{tpu_custom_call.1} parent=5 // pred_region
        // Predicated region
        $region89: #{tpu_custom_call.1} parent=87 // pred_check
          %p589 = pneg %p51
        $region90: #{tpu_custom_call.1} parent=87 // pred_check_branch
          %591 = sbr.rel (%p589) target = $region92
        $region91: #{tpu_custom_call.1} parent=87 // pred_region
          %p592 = scmp.lt.s32.totalorder %s31, 1
          %s593 = scalar_select %p592, %s31, 1
          %s594 = smul.addr %s593, 4
          %s595 = smul.addr %s594, 8
          %s596 = scalar_lea.vmem %s0, %s595
        $region92: #{tpu_custom_call.1} parent=87 // pred_fallthru
          _
      $region88: #{tpu_custom_call.1} parent=5 // pred_fallthru
        _
      %p597 = scmp.le.s32.totalorder 1, %s31
      %p598 = scmp.lt.s32.totalorder %s31, 3
      %p599 = pnand %p597, %p598
      %p600 = pneg %p599
      // Predicated region
      $region93: #{tpu_custom_call.1} parent=5 // pred_check
        _
      $region94: #{tpu_custom_call.1} parent=5 // pred_check_branch
        %602 = sbr.rel (%p599) target = $region96
      $region95: #{tpu_custom_call.1} parent=5 // pred_region
        %s603 = ssub.s32 %s31, 1
        // Predicated region
        $region97: #{tpu_custom_call.1} parent=95 // pred_check
          %p604 = pneg %p78
        $region98: #{tpu_custom_call.1} parent=95 // pred_check_branch
          %606 = sbr.rel (%p604) target = $region100
        $region99: #{tpu_custom_call.1} parent=95 // pred_region
          %608 = dma.done [#allocation3], 256
        $region100: #{tpu_custom_call.1} parent=95 // pred_fallthru
          _
        // Predicated region
        $region101: #{tpu_custom_call.1} parent=95 // pred_check
          %p609 = pneg %p120
        $region102: #{tpu_custom_call.1} parent=95 // pred_check_branch
          %611 = sbr.rel (%p609) target = $region104
        $region103: #{tpu_custom_call.1} parent=95 // pred_region
          %613 = dma.done [#allocation6], 1024
        $region104: #{tpu_custom_call.1} parent=95 // pred_fallthru
          _
        // Predicated region
        $region105: #{tpu_custom_call.1} parent=95 // pred_check
          %p614 = pneg %p162
        $region106: #{tpu_custom_call.1} parent=95 // pred_check_branch
          %616 = sbr.rel (%p614) target = $region108
        $region107: #{tpu_custom_call.1} parent=95 // pred_region
          %618 = dma.done [#allocation6], 1024
        $region108: #{tpu_custom_call.1} parent=95 // pred_fallthru
          _
        // Predicated region
        $region109: #{tpu_custom_call.1} parent=95 // pred_check
          %p619 = pneg %p246
        $region110: #{tpu_custom_call.1} parent=95 // pred_check_branch
          %621 = sbr.rel (%p619) target = $region112
        $region111: #{tpu_custom_call.1} parent=95 // pred_region
          %623 = dma.done [#allocation9], 512
        $region112: #{tpu_custom_call.1} parent=95 // pred_fallthru
          _
        // Predicated region
        $region113: #{tpu_custom_call.1} parent=95 // pred_check
          %p624 = pneg %p330
        $region114: #{tpu_custom_call.1} parent=95 // pred_check_branch
          %626 = sbr.rel (%p624) target = $region116
        $region115: #{tpu_custom_call.1} parent=95 // pred_region
          %628 = dma.done [#allocation9], 512
        $region116: #{tpu_custom_call.1} parent=95 // pred_fallthru
          _
        %p629 = scmp.lt.s32.totalorder %s36, 1
        %s630 = scalar_select %p629, %s36, 1
        %s631 = smul.addr %s630, 4
        %s632 = smul.addr %s631, 8
        %s633 = scalar_lea.vmem %s0, %s632
        %p634 = pneg %p57
        %p635 = pneg %p54
        %p636 = pneg %p78
        %p637 = pneg %p75
        %p638 = pneg %p99
        %p639 = pneg %p96
        %p640 = pneg %p120
        %p641 = pneg %p117
        %p642 = pneg %p141
        %p643 = pneg %p138
        %p644 = pneg %p162
        %p645 = pneg %p159
        %p646 = pneg %p183
        %p647 = pneg %p180
        %p648 = pneg %p204
        %p649 = pneg %p201
        %p650 = pneg %p225
        %p651 = pneg %p222
        %p652 = pneg %p246
        %p653 = pneg %p243
        %p654 = pneg %p267
        %p655 = pneg %p264
        %p656 = pneg %p288
        %p657 = pneg %p285
        %p658 = pneg %p309
        %p659 = pneg %p306
        %p660 = pneg %p330
        %p661 = pneg %p327
        %p662 = pneg %p351
        %p663 = pneg %p348
        %p664 = pneg %p372
        %p665 = pneg %p369
        %p666 = pneg %p393
        %p667 = pneg %p390
        %p668 = pneg %p414
        %p669 = pneg %p411
        %p670 = pneg %p435
        %p671 = pneg %p432
        %p672 = pneg %p461
        %p673 = pneg %p458
        %s674 = sand.u32 %s448, 1
        %s675 = scalar_lea.sflag [#allocation4], %s674
        %s676 = sand.u32 %s448, 1
        %s677 = smul.addr %s676, 4
        %s678 = scalar_lea.vmem [#allocation11], %s677
        %p679 = scmp.lt.s32.totalorder %s36, 1
        %s680 = scalar_select %p679, %s36, 1
        %s681 = smul.addr %s680, 4
        %s682 = smul.addr %s681, 8
        %s683 = scalar_lea.vmem %s0, %s682
        %v684 = vld [vmem:[%s683] sm:$0xff]
        %v685 = vld [vmem:[%s683 + $0x8] sm:$0xff]
        %v686 = vld [vmem:[%s683 + $0x10] sm:$0xff]
        %v687 = vld [vmem:[%s683 + $0x18] sm:$0xff]
        %v688 = vld [vmem:[#allocation2] sm:$0xff]
        %v689 = vld [vmem:[#allocation2 + $0x8] sm:$0xff]
        %v690 = vld [vmem:[%s2] sm:$0x1]
        %v692 = vperm.slane %v690, 0
        %vm694 = vcmask 130048
        %v696 = vsel %vm694, %v684, 0
        %v699 = vsel %vm694, %v685, 0
        %v702 = vsel %vm694, %v686, 0
        %v705 = vsel %vm694, %v687, 0
        %707 = vmatpush.msra.mxu0 0.0
        %708 = vmatpush.msra.mxu0 0.0
        %709 = vmatpush.msra.mxu0 0.0
        %710 = vmatpush.msra.mxu0 0.0
        %711 = vmatpush.msra.mxu0 0.0
        %712 = vmatpush.msra.mxu0 0.0
        %713 = vmatpush.msra.mxu0 0.0
        %714 = vmatpush.msra.mxu0 0.0
        %715 = vmatpush.msra.mxu0 0.0
        %716 = vmatpush.msra.mxu0 0.0
        %717 = vmatpush.msra.mxu0 0.0
        %718 = vmatpush.msra.mxu0 0.0
        %719 = vmatpush.msra.mxu0 0.0
        %720 = vmatpush.msra.mxu0 0.0
        %721 = vmatpush.msra.mxu0 %v689
        %722 = vmatpush.msra.mxu0 %v688
        %723 = vmatmul.f32.gmra.mxu0 %v696
        %v724 = vpop.f32.mrf.mxu0
        %v725 = vadd.f32 %v692, %v724
        %726 = vmatmul.f32.gmra.mxu0 %v699
        %v727 = vpop.f32.mrf.mxu0
        %v728 = vadd.f32 %v692, %v727
        %729 = vmatmul.f32.gmra.mxu0 %v702
        %v730 = vpop.f32.mrf.mxu0
        %v731 = vadd.f32 %v692, %v730
        %732 = vmatmul.f32.gmra.mxu0 %v705
        %v733 = vpop.f32.mrf.mxu0
        %v734 = vadd.f32 %v692, %v733
        %735 = vdwg.mxu0
        %v736 = vld [vmem:[#allocation5] sm:$0xff]
        %v737 = vld [vmem:[#allocation5 + $0x8] sm:$0xff]
        %v738 = vld [vmem:[#allocation5 + $0x10] sm:$0xff]
        %v739 = vld [vmem:[#allocation5 + $0x18] sm:$0xff]
        %v740 = vld [vmem:[#allocation5 + $0x20] sm:$0xff]
        %v741 = vld [vmem:[#allocation5 + $0x28] sm:$0xff]
        %v742 = vld [vmem:[#allocation5 + $0x30] sm:$0xff]
        %v743 = vld [vmem:[#allocation5 + $0x38] sm:$0xff]
        %v744 = vld [vmem:[#allocation7] sm:$0xff]
        %v745 = vld [vmem:[#allocation7 + $0x8] sm:$0xff]
        %v746 = vld [vmem:[#allocation7 + $0x10] sm:$0xff]
        %v747 = vld [vmem:[#allocation7 + $0x18] sm:$0xff]
        %v748 = vld [vmem:[#allocation7 + $0x20] sm:$0xff]
        %v749 = vld [vmem:[#allocation7 + $0x28] sm:$0xff]
        %v750 = vld [vmem:[#allocation7 + $0x30] sm:$0xff]
        %v751 = vld [vmem:[#allocation7 + $0x38] sm:$0xff]
        %v752 = vld [vmem:[%s4] sm:$0x1]
        %v754 = vperm.slane %v752, 0
        %v756 = vadd.f32 %v754, 0.0
        %v761 = vrot.slane %v725, 7
        %v762 = vrot.slane %v728, 7
        %v763 = vrot.slane %v731, 7
        %v764 = vrot.slane %v734, 7
        %vm769 = vcmask 1040384
        %v770 = vsel %vm769, 0.0, %v761
        %v771 = vsel %vm769, 0.0, %v762
        %v772 = vsel %vm769, 0.0, %v763
        %v773 = vsel %vm769, 0.0, %v764
        %vm774 = vcmask 261120
        %v776 = vsel %vm774, %v770, 0
        %v779 = vsel %vm774, %v771, 0
        %v782 = vsel %vm774, %v772, 0
        %v785 = vsel %vm774, %v773, 0
        %787 = vmatpush.msra.mxu0 0.0
        %788 = vmatpush.msra.mxu0 0.0
        %789 = vmatpush.msra.mxu0 0.0
        %790 = vmatpush.msra.mxu0 0.0
        %791 = vmatpush.msra.mxu0 0.0
        %792 = vmatpush.msra.mxu0 0.0
        %793 = vmatpush.msra.mxu0 0.0
        %794 = vmatpush.msra.mxu0 0.0
        %795 = vmatpush.msra.mxu0 0.0
        %796 = vmatpush.msra.mxu0 0.0
        %797 = vmatpush.msra.mxu0 0.0
        %798 = vmatpush.msra.mxu0 0.0
        %799 = vmatpush.msra.mxu0 %v739
        %800 = vmatpush.msra.mxu0 %v738
        %801 = vmatpush.msra.mxu0 %v737
        %802 = vmatpush.msra.mxu0 %v736
        %803 = vmatmul.f32.gmra.mxu0 %v776
        %v804 = vpop.f32.mrf.mxu0
        %v805 = vadd.f32 0.0, %v804
        %806 = vmatmul.f32.gmra.mxu0 %v779
        %v807 = vpop.f32.mrf.mxu0
        %v808 = vadd.f32 0.0, %v807
        %809 = vmatmul.f32.gmra.mxu0 %v782
        %v810 = vpop.f32.mrf.mxu0
        %v811 = vadd.f32 0.0, %v810
        %812 = vmatmul.f32.gmra.mxu0 %v785
        %v813 = vpop.f32.mrf.mxu0
        %v814 = vadd.f32 0.0, %v813
        %815 = vdwg.mxu0
        %v816 = vadd.f32 %v756, %v805
        %v817 = vadd.f32 %v756, %v808
        %v818 = vadd.f32 %v756, %v811
        %v819 = vadd.f32 %v756, %v814
        %v820 = vsel %vm774, %v725, 0
        %v822 = vsel %vm774, %v728, 0
        %v824 = vsel %vm774, %v731, 0
        %v826 = vsel %vm774, %v734, 0
        %828 = vmatpush.msra.mxu0 0.0
        %829 = vmatpush.msra.mxu0 0.0
        %830 = vmatpush.msra.mxu0 0.0
        %831 = vmatpush.msra.mxu0 0.0
        %832 = vmatpush.msra.mxu0 0.0
        %833 = vmatpush.msra.mxu0 0.0
        %834 = vmatpush.msra.mxu0 0.0
        %835 = vmatpush.msra.mxu0 0.0
        %836 = vmatpush.msra.mxu0 0.0
        %837 = vmatpush.msra.mxu0 0.0
        %838 = vmatpush.msra.mxu0 0.0
        %839 = vmatpush.msra.mxu0 0.0
        %840 = vmatpush.msra.mxu0 %v743
        %841 = vmatpush.msra.mxu0 %v742
        %842 = vmatpush.msra.mxu0 %v741
        %843 = vmatpush.msra.mxu0 %v740
        %844 = vmatmul.f32.gmra.mxu0 %v820
        %v845 = vpop.f32.mrf.mxu0
        %v846 = vadd.f32 0.0, %v845
        %847 = vmatmul.f32.gmra.mxu0 %v822
        %v848 = vpop.f32.mrf.mxu0
        %v849 = vadd.f32 0.0, %v848
        %850 = vmatmul.f32.gmra.mxu0 %v824
        %v851 = vpop.f32.mrf.mxu0
        %v852 = vadd.f32 0.0, %v851
        %853 = vmatmul.f32.gmra.mxu0 %v826
        %v854 = vpop.f32.mrf.mxu0
        %v855 = vadd.f32 0.0, %v854
        %856 = vdwg.mxu0
        %v857 = vadd.f32 %v816, %v846
        %v858 = vadd.f32 %v817, %v849
        %v859 = vadd.f32 %v818, %v852
        %v860 = vadd.f32 %v819, %v855
        %v861 = vmax.f32 %v857, 0.0
        %v862 = vmax.f32 %v858, 0.0
        %v863 = vmax.f32 %v859, 0.0
        %v864 = vmax.f32 %v860, 0.0
        %v865 = vld [vmem:[%s6] sm:$0x1]
        %v867 = vperm.slane %v865, 0
        %v869 = vadd.f32 %v867, 0.0
        %v874 = vrot.slane %v861, 7
        %v875 = vrot.slane %v862, 7
        %v876 = vrot.slane %v863, 7
        %v877 = vrot.slane %v864, 7
        %v882 = vsel %vm769, 0.0, %v874
        %v883 = vsel %vm769, 0.0, %v875
        %v884 = vsel %vm769, 0.0, %v876
        %v885 = vsel %vm769, 0.0, %v877
        %v887 = vsel %vm774, %v882, 0
        %v890 = vsel %vm774, %v883, 0
        %v893 = vsel %vm774, %v884, 0
        %v896 = vsel %vm774, %v885, 0
        %898 = vmatpush.msra.mxu0 0.0
        %899 = vmatpush.msra.mxu0 0.0
        %900 = vmatpush.msra.mxu0 0.0
        %901 = vmatpush.msra.mxu0 0.0
        %902 = vmatpush.msra.mxu0 0.0
        %903 = vmatpush.msra.mxu0 0.0
        %904 = vmatpush.msra.mxu0 0.0
        %905 = vmatpush.msra.mxu0 0.0
        %906 = vmatpush.msra.mxu0 0.0
        %907 = vmatpush.msra.mxu0 0.0
        %908 = vmatpush.msra.mxu0 0.0
        %909 = vmatpush.msra.mxu0 0.0
        %910 = vmatpush.msra.mxu0 %v747
        %911 = vmatpush.msra.mxu0 %v746
        %912 = vmatpush.msra.mxu0 %v745
        %913 = vmatpush.msra.mxu0 %v744
        %914 = vmatmul.f32.gmra.mxu0 %v887
        %v915 = vpop.f32.mrf.mxu0
        %v916 = vadd.f32 0.0, %v915
        %917 = vmatmul.f32.gmra.mxu0 %v890
        %v918 = vpop.f32.mrf.mxu0
        %v919 = vadd.f32 0.0, %v918
        %920 = vmatmul.f32.gmra.mxu0 %v893
        %v921 = vpop.f32.mrf.mxu0
        %v922 = vadd.f32 0.0, %v921
        %923 = vmatmul.f32.gmra.mxu0 %v896
        %v924 = vpop.f32.mrf.mxu0
        %v925 = vadd.f32 0.0, %v924
        %926 = vdwg.mxu0
        %v927 = vadd.f32 %v869, %v916
        %v928 = vadd.f32 %v869, %v919
        %v929 = vadd.f32 %v869, %v922
        %v930 = vadd.f32 %v869, %v925
        %v931 = vsel %vm774, %v861, 0
        %v933 = vsel %vm774, %v862, 0
        %v935 = vsel %vm774, %v863, 0
        %v937 = vsel %vm774, %v864, 0
        %939 = vmatpush.msra.mxu0 0.0
        %940 = vmatpush.msra.mxu0 0.0
        %941 = vmatpush.msra.mxu0 0.0
        %942 = vmatpush.msra.mxu0 0.0
        %943 = vmatpush.msra.mxu0 0.0
        %944 = vmatpush.msra.mxu0 0.0
        %945 = vmatpush.msra.mxu0 0.0
        %946 = vmatpush.msra.mxu0 0.0
        %947 = vmatpush.msra.mxu0 0.0
        %948 = vmatpush.msra.mxu0 0.0
        %949 = vmatpush.msra.mxu0 0.0
        %950 = vmatpush.msra.mxu0 0.0
        %951 = vmatpush.msra.mxu0 %v751
        %952 = vmatpush.msra.mxu0 %v750
        %953 = vmatpush.msra.mxu0 %v749
        %954 = vmatpush.msra.mxu0 %v748
        %955 = vmatmul.f32.gmra.mxu0 %v931
        %v956 = vpop.f32.mrf.mxu0
        %v957 = vadd.f32 0.0, %v956
        %958 = vmatmul.f32.gmra.mxu0 %v933
        %v959 = vpop.f32.mrf.mxu0
        %v960 = vadd.f32 0.0, %v959
        %961 = vmatmul.f32.gmra.mxu0 %v935
        %v962 = vpop.f32.mrf.mxu0
        %v963 = vadd.f32 0.0, %v962
        %964 = vmatmul.f32.gmra.mxu0 %v937
        %v965 = vpop.f32.mrf.mxu0
        %v966 = vadd.f32 0.0, %v965
        %967 = vdwg.mxu0
        %v968 = vadd.f32 %v927, %v957
        %v969 = vadd.f32 %v928, %v960
        %v970 = vadd.f32 %v929, %v963
        %v971 = vadd.f32 %v930, %v966
        %v972 = vadd.f32 %v968, %v725
        %v973 = vadd.f32 %v969, %v728
        %v974 = vadd.f32 %v970, %v731
        %v975 = vadd.f32 %v971, %v734
        %v976 = vmax.f32 %v972, 0.0
        %v977 = vmax.f32 %v973, 0.0
        %v978 = vmax.f32 %v974, 0.0
        %v979 = vmax.f32 %v975, 0.0
        %v980 = vld [vmem:[%s7] sm:$0xff]
        %v981 = vld [vmem:[%s7 + $0x8] sm:$0xff]
        %v982 = vld [vmem:[%s7 + $0x10] sm:$0xff]
        %v983 = vld [vmem:[%s7 + $0x18] sm:$0xff]
        %v984 = vld [vmem:[%s8] sm:$0x1]
        %v986 = vperm.slane %v984, 0
        %v992 = vrot.slane %v976, 7
        %v993 = vrot.slane %v977, 6
        %vm994 = vcmask 1041409
        %v995 = vsel %vm994, %v993, %v992
        %v996 = vrot.slane %v978, 5
        %vm997 = vcmask 1042434
        %v998 = vsel %vm997, %v996, %v995
        %v999 = vrot.slane %v979, 4
        %vm1000 = vcmask 1043459
        %v1001 = vsel %vm1000, %v999, %v998
        %v1002 = vsel %vm774, %v1001, 0
        %1004 = vmatpush.msra.mxu0 0.0
        %1005 = vmatpush.msra.mxu0 0.0
        %1006 = vmatpush.msra.mxu0 0.0
        %1007 = vmatpush.msra.mxu0 0.0
        %1008 = vmatpush.msra.mxu0 0.0
        %1009 = vmatpush.msra.mxu0 0.0
        %1010 = vmatpush.msra.mxu0 0.0
        %1011 = vmatpush.msra.mxu0 0.0
        %1012 = vmatpush.msra.mxu0 0.0
        %1013 = vmatpush.msra.mxu0 0.0
        %1014 = vmatpush.msra.mxu0 0.0
        %1015 = vmatpush.msra.mxu0 0.0
        %1016 = vmatpush.msra.mxu0 %v983
        %1017 = vmatpush.msra.mxu0 %v982
        %1018 = vmatpush.msra.mxu0 %v981
        %1019 = vmatpush.msra.mxu0 %v980
        %1020 = vmatmul.f32.gmra.mxu0 %v1002
        %v1021 = vpop.f32.mrf.mxu0
        %v1022 = vadd.f32 %v986, %v1021
        %1023 = vdwg.mxu0
        %1025 = vrot.lane.b32.xlu0 %v1022, 96
        %v1026 = vpop.permute.xlu0 %1025
        %vm1027 = vcmask 64512
        %v1028 = vsel %vm1027, %v1022, 0
        %v1030 = vsel %vm1027, %v1026, 0
        %1032 = vmatpush.xpose.msra.mxu0 0.0
        %1033 = vmatpush.xpose.msra.mxu0 0.0
        %1034 = vmatpush.xpose.msra.mxu0 0.0
        %1035 = vmatpush.xpose.msra.mxu0 0.0
        %1036 = vmatpush.xpose.msra.mxu0 0.0
        %1037 = vmatpush.xpose.msra.mxu0 0.0
        %1038 = vmatpush.xpose.msra.mxu0 0.0
        %1039 = vmatpush.xpose.msra.mxu0 0.0
        %1040 = vmatpush.xpose.msra.mxu0 0.0
        %1041 = vmatpush.xpose.msra.mxu0 0.0
        %1042 = vmatpush.xpose.msra.mxu0 0.0
        %1043 = vmatpush.xpose.msra.mxu0 0.0
        %1044 = vmatpush.xpose.msra.mxu0 0.0
        %1045 = vmatpush.xpose.msra.mxu0 0.0
        %1046 = vmatpush.xpose.msra.mxu0 0.0
        %1047 = vmatpush.xpose.msra.mxu0 %v1030
        %1048 = vmatmul.f32.gmra.mxu0 %v1028
        %v1049 = vpop.f32.mrf.mxu0
        %v1050 = vadd.f32 0.0, %v1049
        %1051 = vdwg.mxu0
        %v1052 = vmul.f32 %v1050, 0.35355338
        %vm1053 = vcmask 27648
        %v1054 = vsel %vm1053, %v1052, -inf
        %1055 = vmax.xlane.f32.xlu0 %v1054
        %v1056 = vpop.xlane.xlu0 %1055
        %v1057 = vsub.f32 %v1052, %v1056
        %v1058 = vmul.f32 %v1057, 1.442695
        %v1059 = vpow.pop %v1058
        %v1060 = vsel %vm1053, %v1059, 0.0
        %1061 = vadd.xlane.f32.xlu0 %v1060
        %v1062 = vpop.xlane.xlu0 %1061
        %v1063 = vrcp.pop %v1062
        %v1064 = vmul.f32 %v1062, %v1063
        %v1065 = vsub.f32 1.0, %v1064
        %v1066 = vmul.f32 %v1063, %v1065
        %v1067 = vadd.f32 %v1063, %v1066
        %vm1068 = vweird.f32 %v1062
        %vm1069 = vweird.f32 %v1063
        %vm1070 = vmor %vm1068, %vm1069
        %v1071 = vsel %vm1070, %v1063, %v1067
        %v1072 = vand.u32 2147483647, %v1062
        %vm1073 = vcmp.eq.f32.partialorder %v1072, 8.507059e+37
        %v1074 = vand.u32 %v1062, 2147483648
        %v1075 = vor.u32 1.1754944e-38, %v1074
        %v1076 = vsel %vm1073, %v1075, %v1071
        %v1077 = vmul.f32 %v1059, %v1076
        %1078 = vrot.lane.b32.xlu0 %v1022, 64
        %v1079 = vpop.permute.xlu0 %1078
        %vm1080 = vcmask 31744
        %v1082 = vsel %vm1080, %v1077, 0
        %vm1084 = vcmask 1043456
        %v1085 = vsel %vm1084, %v1079, 0
        %1087 = vmatpush.msra.mxu0 0.0
        %1088 = vmatpush.msra.mxu0 0.0
        %1089 = vmatpush.msra.mxu0 0.0
        %1090 = vmatpush.msra.mxu0 0.0
        %1091 = vmatpush.msra.mxu0 0.0
        %1092 = vmatpush.msra.mxu0 0.0
        %1093 = vmatpush.msra.mxu0 0.0
        %1094 = vmatpush.msra.mxu0 0.0
        %1095 = vmatpush.msra.mxu0 0.0
        %1096 = vmatpush.msra.mxu0 0.0
        %1097 = vmatpush.msra.mxu0 0.0
        %1098 = vmatpush.msra.mxu0 0.0
        %1099 = vmatpush.msra.mxu0 0.0
        %1100 = vmatpush.msra.mxu0 0.0
        %1101 = vmatpush.msra.mxu0 0.0
        %1102 = vmatpush.msra.mxu0 %v1085
        %1103 = vmatmul.f32.gmra.mxu0 %v1082
        %v1104 = vpop.f32.mrf.mxu0
        %v1105 = vadd.f32 0.0, %v1104
        %1106 = vdwg.mxu0
        %1107 = vrot.lane.b32.xlu0 %v1022, 120
        %v1108 = vpop.permute.xlu0 %1107
        %1109 = vrot.lane.b32.xlu0 %v1022, 88
        %v1110 = vpop.permute.xlu0 %1109
        %v1111 = vsel %vm1027, %v1108, 0
        %v1113 = vsel %vm1027, %v1110, 0
        %1115 = vmatpush.xpose.msra.mxu0 0.0
        %1116 = vmatpush.xpose.msra.mxu0 0.0
        %1117 = vmatpush.xpose.msra.mxu0 0.0
        %1118 = vmatpush.xpose.msra.mxu0 0.0
        %1119 = vmatpush.xpose.msra.mxu0 0.0
        %1120 = vmatpush.xpose.msra.mxu0 0.0
        %1121 = vmatpush.xpose.msra.mxu0 0.0
        %1122 = vmatpush.xpose.msra.mxu0 0.0
        %1123 = vmatpush.xpose.msra.mxu0 0.0
        %1124 = vmatpush.xpose.msra.mxu0 0.0
        %1125 = vmatpush.xpose.msra.mxu0 0.0
        %1126 = vmatpush.xpose.msra.mxu0 0.0
        %1127 = vmatpush.xpose.msra.mxu0 0.0
        %1128 = vmatpush.xpose.msra.mxu0 0.0
        %1129 = vmatpush.xpose.msra.mxu0 0.0
        %1130 = vmatpush.xpose.msra.mxu0 %v1113
        %1131 = vmatmul.f32.gmra.mxu0 %v1111
        %v1132 = vpop.f32.mrf.mxu0
        %v1133 = vadd.f32 0.0, %v1132
        %1134 = vdwg.mxu0
        %v1135 = vmul.f32 %v1133, 0.35355338
        %v1136 = vsel %vm1053, %v1135, -inf
        %1137 = vmax.xlane.f32.xlu0 %v1136
        %v1138 = vpop.xlane.xlu0 %1137
        %v1139 = vsub.f32 %v1135, %v1138
        %v1140 = vmul.f32 %v1139, 1.442695
        %v1141 = vpow.pop %v1140
        %v1142 = vsel %vm1053, %v1141, 0.0
        %1143 = vadd.xlane.f32.xlu0 %v1142
        %v1144 = vpop.xlane.xlu0 %1143
        %v1145 = vrcp.pop %v1144
        %v1146 = vmul.f32 %v1144, %v1145
        %v1147 = vsub.f32 1.0, %v1146
        %v1148 = vmul.f32 %v1145, %v1147
        %v1149 = vadd.f32 %v1145, %v1148
        %vm1150 = vweird.f32 %v1144
        %vm1151 = vweird.f32 %v1145
        %vm1152 = vmor %vm1150, %vm1151
        %v1153 = vsel %vm1152, %v1145, %v1149
        %v1154 = vand.u32 2147483647, %v1144
        %vm1155 = vcmp.eq.f32.partialorder %v1154, 8.507059e+37
        %v1156 = vand.u32 %v1144, 2147483648
        %v1157 = vor.u32 1.1754944e-38, %v1156
        %v1158 = vsel %vm1155, %v1157, %v1153
        %v1159 = vmul.f32 %v1141, %v1158
        %1160 = vrot.lane.b32.xlu0 %v1022, 56
        %v1161 = vpop.permute.xlu0 %1160
        %v1163 = vsel %vm1080, %v1159, 0
        %v1165 = vsel %vm1084, %v1161, 0
        %1167 = vmatpush.msra.mxu0 0.0
        %1168 = vmatpush.msra.mxu0 0.0
        %1169 = vmatpush.msra.mxu0 0.0
        %1170 = vmatpush.msra.mxu0 0.0
        %1171 = vmatpush.msra.mxu0 0.0
        %1172 = vmatpush.msra.mxu0 0.0
        %1173 = vmatpush.msra.mxu0 0.0
        %1174 = vmatpush.msra.mxu0 0.0
        %1175 = vmatpush.msra.mxu0 0.0
        %1176 = vmatpush.msra.mxu0 0.0
        %1177 = vmatpush.msra.mxu0 0.0
        %1178 = vmatpush.msra.mxu0 0.0
        %1179 = vmatpush.msra.mxu0 0.0
        %1180 = vmatpush.msra.mxu0 0.0
        %1181 = vmatpush.msra.mxu0 0.0
        %1182 = vmatpush.msra.mxu0 %v1165
        %1183 = vmatmul.f32.gmra.mxu0 %v1163
        %v1184 = vpop.f32.mrf.mxu0
        %v1185 = vadd.f32 0.0, %v1184
        %1186 = vdwg.mxu0
        %1187 = vrot.lane.b32.xlu0 %v1022, 112
        %v1188 = vpop.permute.xlu0 %1187
        %1189 = vrot.lane.b32.xlu0 %v1022, 80
        %v1190 = vpop.permute.xlu0 %1189
        %v1191 = vsel %vm1027, %v1188, 0
        %v1193 = vsel %vm1027, %v1190, 0
        %1195 = vmatpush.xpose.msra.mxu0 0.0
        %1196 = vmatpush.xpose.msra.mxu0 0.0
        %1197 = vmatpush.xpose.msra.mxu0 0.0
        %1198 = vmatpush.xpose.msra.mxu0 0.0
        %1199 = vmatpush.xpose.msra.mxu0 0.0
        %1200 = vmatpush.xpose.msra.mxu0 0.0
        %1201 = vmatpush.xpose.msra.mxu0 0.0
        %1202 = vmatpush.xpose.msra.mxu0 0.0
        %1203 = vmatpush.xpose.msra.mxu0 0.0
        %1204 = vmatpush.xpose.msra.mxu0 0.0
        %1205 = vmatpush.xpose.msra.mxu0 0.0
        %1206 = vmatpush.xpose.msra.mxu0 0.0
        %1207 = vmatpush.xpose.msra.mxu0 0.0
        %1208 = vmatpush.xpose.msra.mxu0 0.0
        %1209 = vmatpush.xpose.msra.mxu0 0.0
        %1210 = vmatpush.xpose.msra.mxu0 %v1193
        %1211 = vmatmul.f32.gmra.mxu0 %v1191
        %v1212 = vpop.f32.mrf.mxu0
        %v1213 = vadd.f32 0.0, %v1212
        %1214 = vdwg.mxu0
        %v1215 = vmul.f32 %v1213, 0.35355338
        %v1216 = vsel %vm1053, %v1215, -inf
        %1217 = vmax.xlane.f32.xlu0 %v1216
        %v1218 = vpop.xlane.xlu0 %1217
        %v1219 = vsub.f32 %v1215, %v1218
        %v1220 = vmul.f32 %v1219, 1.442695
        %v1221 = vpow.pop %v1220
        %v1222 = vsel %vm1053, %v1221, 0.0
        %1223 = vadd.xlane.f32.xlu0 %v1222
        %v1224 = vpop.xlane.xlu0 %1223
        %v1225 = vrcp.pop %v1224
        %v1226 = vmul.f32 %v1224, %v1225
        %v1227 = vsub.f32 1.0, %v1226
        %v1228 = vmul.f32 %v1225, %v1227
        %v1229 = vadd.f32 %v1225, %v1228
        %vm1230 = vweird.f32 %v1224
        %vm1231 = vweird.f32 %v1225
        %vm1232 = vmor %vm1230, %vm1231
        %v1233 = vsel %vm1232, %v1225, %v1229
        %v1234 = vand.u32 2147483647, %v1224
        %vm1235 = vcmp.eq.f32.partialorder %v1234, 8.507059e+37
        %v1236 = vand.u32 %v1224, 2147483648
        %v1237 = vor.u32 1.1754944e-38, %v1236
        %v1238 = vsel %vm1235, %v1237, %v1233
        %v1239 = vmul.f32 %v1221, %v1238
        %1240 = vrot.lane.b32.xlu0 %v1022, 48
        %v1241 = vpop.permute.xlu0 %1240
        %v1243 = vsel %vm1080, %v1239, 0
        %v1245 = vsel %vm1084, %v1241, 0
        %1247 = vmatpush.msra.mxu0 0.0
        %1248 = vmatpush.msra.mxu0 0.0
        %1249 = vmatpush.msra.mxu0 0.0
        %1250 = vmatpush.msra.mxu0 0.0
        %1251 = vmatpush.msra.mxu0 0.0
        %1252 = vmatpush.msra.mxu0 0.0
        %1253 = vmatpush.msra.mxu0 0.0
        %1254 = vmatpush.msra.mxu0 0.0
        %1255 = vmatpush.msra.mxu0 0.0
        %1256 = vmatpush.msra.mxu0 0.0
        %1257 = vmatpush.msra.mxu0 0.0
        %1258 = vmatpush.msra.mxu0 0.0
        %1259 = vmatpush.msra.mxu0 0.0
        %1260 = vmatpush.msra.mxu0 0.0
        %1261 = vmatpush.msra.mxu0 0.0
        %1262 = vmatpush.msra.mxu0 %v1245
        %1263 = vmatmul.f32.gmra.mxu0 %v1243
        %v1264 = vpop.f32.mrf.mxu0
        %v1265 = vadd.f32 0.0, %v1264
        %1266 = vdwg.mxu0
        %1267 = vrot.lane.b32.xlu0 %v1022, 104
        %v1268 = vpop.permute.xlu0 %1267
        %1269 = vrot.lane.b32.xlu0 %v1022, 72
        %v1270 = vpop.permute.xlu0 %1269
        %v1271 = vsel %vm1027, %v1268, 0
        %v1273 = vsel %vm1027, %v1270, 0
        %1275 = vmatpush.xpose.msra.mxu0 0.0
        %1276 = vmatpush.xpose.msra.mxu0 0.0
        %1277 = vmatpush.xpose.msra.mxu0 0.0
        %1278 = vmatpush.xpose.msra.mxu0 0.0
        %1279 = vmatpush.xpose.msra.mxu0 0.0
        %1280 = vmatpush.xpose.msra.mxu0 0.0
        %1281 = vmatpush.xpose.msra.mxu0 0.0
        %1282 = vmatpush.xpose.msra.mxu0 0.0
        %1283 = vmatpush.xpose.msra.mxu0 0.0
        %1284 = vmatpush.xpose.msra.mxu0 0.0
        %1285 = vmatpush.xpose.msra.mxu0 0.0
        %1286 = vmatpush.xpose.msra.mxu0 0.0
        %1287 = vmatpush.xpose.msra.mxu0 0.0
        %1288 = vmatpush.xpose.msra.mxu0 0.0
        %1289 = vmatpush.xpose.msra.mxu0 0.0
        %1290 = vmatpush.xpose.msra.mxu0 %v1273
        %1291 = vmatmul.f32.gmra.mxu0 %v1271
        %v1292 = vpop.f32.mrf.mxu0
        %v1293 = vadd.f32 0.0, %v1292
        %1294 = vdwg.mxu0
        %v1295 = vmul.f32 %v1293, 0.35355338
        %v1296 = vsel %vm1053, %v1295, -inf
        %1297 = vmax.xlane.f32.xlu0 %v1296
        %v1298 = vpop.xlane.xlu0 %1297
        %v1299 = vsub.f32 %v1295, %v1298
        %v1300 = vmul.f32 %v1299, 1.442695
        %v1301 = vpow.pop %v1300
        %v1302 = vsel %vm1053, %v1301, 0.0
        %1303 = vadd.xlane.f32.xlu0 %v1302
        %v1304 = vpop.xlane.xlu0 %1303
        %v1305 = vrcp.pop %v1304
        %v1306 = vmul.f32 %v1304, %v1305
        %v1307 = vsub.f32 1.0, %v1306
        %v1308 = vmul.f32 %v1305, %v1307
        %v1309 = vadd.f32 %v1305, %v1308
        %vm1310 = vweird.f32 %v1304
        %vm1311 = vweird.f32 %v1305
        %vm1312 = vmor %vm1310, %vm1311
        %v1313 = vsel %vm1312, %v1305, %v1309
        %v1314 = vand.u32 2147483647, %v1304
        %vm1315 = vcmp.eq.f32.partialorder %v1314, 8.507059e+37
        %v1316 = vand.u32 %v1304, 2147483648
        %v1317 = vor.u32 1.1754944e-38, %v1316
        %v1318 = vsel %vm1315, %v1317, %v1313
        %v1319 = vmul.f32 %v1301, %v1318
        %1320 = vrot.lane.b32.xlu0 %v1022, 40
        %v1321 = vpop.permute.xlu0 %1320
        %v1323 = vsel %vm1080, %v1319, 0
        %v1325 = vsel %vm1084, %v1321, 0
        %1327 = vmatpush.msra.mxu0 0.0
        %1328 = vmatpush.msra.mxu0 0.0
        %1329 = vmatpush.msra.mxu0 0.0
        %1330 = vmatpush.msra.mxu0 0.0
        %1331 = vmatpush.msra.mxu0 0.0
        %1332 = vmatpush.msra.mxu0 0.0
        %1333 = vmatpush.msra.mxu0 0.0
        %1334 = vmatpush.msra.mxu0 0.0
        %1335 = vmatpush.msra.mxu0 0.0
        %1336 = vmatpush.msra.mxu0 0.0
        %1337 = vmatpush.msra.mxu0 0.0
        %1338 = vmatpush.msra.mxu0 0.0
        %1339 = vmatpush.msra.mxu0 0.0
        %1340 = vmatpush.msra.mxu0 0.0
        %1341 = vmatpush.msra.mxu0 0.0
        %1342 = vmatpush.msra.mxu0 %v1325
        %1343 = vmatmul.f32.gmra.mxu0 %v1323
        %v1344 = vpop.f32.mrf.mxu0
        %v1345 = vadd.f32 0.0, %v1344
        %1346 = vdwg.mxu0
        %1348 = vrot.lane.b32.xlu0 %v1185, 8
        %v1349 = vpop.permute.xlu0 %1348
        %1352 = vrot.lane.b32.xlu0 %v1265, 16
        %v1353 = vpop.permute.xlu0 %1352
        %1356 = vrot.lane.b32.xlu0 %v1345, 24
        %v1357 = vpop.permute.xlu0 %1356
        %v1359 = vsel %vm1027, %v1105, %v1349
        %v1360 = vsel %vm694, %v1359, %v1353
        %vm1361 = vcmask 195584
        %v1362 = vsel %vm1361, %v1360, %v1357
        %v1363 = vld [vmem:[#allocation8] sm:$0xff]
        %v1364 = vld [vmem:[#allocation8 + $0x8] sm:$0xff]
        %v1365 = vld [vmem:[#allocation8 + $0x10] sm:$0xff]
        %v1366 = vld [vmem:[#allocation8 + $0x18] sm:$0xff]
        %v1367 = vld [vmem:[%s10] sm:$0x1]
        %v1369 = vperm.slane %v1367, 0
        %v1372 = vsel %vm774, %v1362, 0
        %1374 = vmatpush.msra.mxu0 0.0
        %1375 = vmatpush.msra.mxu0 0.0
        %1376 = vmatpush.msra.mxu0 0.0
        %1377 = vmatpush.msra.mxu0 0.0
        %1378 = vmatpush.msra.mxu0 0.0
        %1379 = vmatpush.msra.mxu0 0.0
        %1380 = vmatpush.msra.mxu0 0.0
        %1381 = vmatpush.msra.mxu0 0.0
        %1382 = vmatpush.msra.mxu0 0.0
        %1383 = vmatpush.msra.mxu0 0.0
        %1384 = vmatpush.msra.mxu0 0.0
        %1385 = vmatpush.msra.mxu0 0.0
        %1386 = vmatpush.msra.mxu0 %v1366
        %1387 = vmatpush.msra.mxu0 %v1365
        %1388 = vmatpush.msra.mxu0 %v1364
        %1389 = vmatpush.msra.mxu0 %v1363
        %1390 = vmatmul.f32.gmra.mxu0 %v1372
        %v1391 = vpop.f32.mrf.mxu0
        %v1392 = vadd.f32 %v1369, %v1391
        %1393 = vdwg.mxu0
        %v1395 = vrot.slane %v1392, 1
        %v1396 = vrot.slane %v1392, 2
        %v1397 = vrot.slane %v1392, 3
        %v1398 = vrot.slane %v1392, 4
        %v1403 = vadd.f32 %v976, %v1395
        %v1404 = vadd.f32 %v977, %v1396
        %v1405 = vadd.f32 %v978, %v1397
        %v1406 = vadd.f32 %v979, %v1398
        %v1407 = vld [vmem:[%s11] sm:$0x1]
        %v1408 = vld [vmem:[%s12] sm:$0x1]
        %v1413 = vrot.slane %v1404, 7
        %v1414 = vrot.slane %v1405, 6
        %v1415 = vsel %vm994, %v1414, %v1413
        %v1416 = vrot.slane %v1406, 5
        %v1417 = vsel %vm997, %v1416, %v1415
        %vm1420 = vcmask 261127
        %v1421 = vsel %vm1420, %v1403, 0.0
        %1422 = vadd.xlane.f32.xlu0 %v1421
        %v1423 = vpop.xlane.xlu0 %1422
        %vm1424 = vcmask 256000
        %v1425 = vsel %vm1424, %v1417, 0.0
        %1426 = vadd.xlane.f32.xlu0 %v1425
        %v1427 = vpop.xlane.xlu0 %1426
        %v1428 = vrcp.pop 32.0
        %v1429 = vmul.f32 32.0, %v1428
        %v1430 = vsub.f32 1.0, %v1429
        %v1431 = vmul.f32 %v1428, %v1430
        %v1432 = vadd.f32 %v1428, %v1431
        %vm1433 = vweird.f32 %v1428
        %v1434 = vsel %vm1433, %v1428, %v1432
        %v1435 = vmul.f32 %v1423, %v1434
        %v1436 = vmul.f32 %v1427, %v1434
        %v1439 = vrot.slane %v1436, 1
        %v1440 = vrot.slane %v1436, 2
        %v1441 = vrot.slane %v1436, 3
        %v1446 = vsub.f32 %v1403, %v1435
        %v1447 = vsub.f32 %v1404, %v1439
        %v1448 = vsub.f32 %v1405, %v1440
        %v1449 = vsub.f32 %v1406, %v1441
        %v1450 = vmul.f32 %v1446, %v1446
        %v1451 = vmul.f32 %v1447, %v1447
        %v1452 = vmul.f32 %v1448, %v1448
        %v1453 = vmul.f32 %v1449, %v1449
        %v1458 = vrot.slane %v1451, 7
        %v1459 = vrot.slane %v1452, 6
        %v1460 = vsel %vm994, %v1459, %v1458
        %v1461 = vrot.slane %v1453, 5
        %v1462 = vsel %vm997, %v1461, %v1460
        %v1465 = vsel %vm1420, %v1450, 0.0
        %1466 = vadd.xlane.f32.xlu0 %v1465
        %v1467 = vpop.xlane.xlu0 %1466
        %v1468 = vsel %vm1424, %v1462, 0.0
        %1469 = vadd.xlane.f32.xlu0 %v1468
        %v1470 = vpop.xlane.xlu0 %1469
        %v1471 = vmul.f32 %v1467, %v1434
        %v1472 = vmul.f32 %v1470, %v1434
        %v1473 = vadd.f32 %v1471, 1e-05
        %v1474 = vadd.f32 %v1472, 1e-05
        %v1475 = vrsqrt.pop %v1473
        %v1476 = vmul.f32 %v1475, %v1473
        %v1477 = vmul.f32 %v1476, %v1475
        %v1478 = vmul.f32 0.5, %v1477
        %v1479 = vsub.f32 1.5, %v1478
        %v1480 = vmul.f32 %v1475, %v1479
        %vm1481 = vweird.f32 %v1473
        %vm1482 = vweird.f32 %v1475
        %vm1483 = vmor %vm1481, %vm1482
        %v1484 = vsel %vm1483, %v1475, %v1480
        %v1485 = vrsqrt.pop %v1474
        %v1486 = vmul.f32 %v1485, %v1474
        %v1487 = vmul.f32 %v1486, %v1485
        %v1488 = vmul.f32 0.5, %v1487
        %v1489 = vsub.f32 1.5, %v1488
        %v1490 = vmul.f32 %v1485, %v1489
        %vm1491 = vweird.f32 %v1474
        %vm1492 = vweird.f32 %v1485
        %vm1493 = vmor %vm1491, %vm1492
        %v1494 = vsel %vm1493, %v1485, %v1490
        %v1497 = vrot.slane %v1494, 1
        %v1498 = vrot.slane %v1494, 2
        %v1499 = vrot.slane %v1494, 3
        %v1504 = vmul.f32 %v1446, %v1484
        %v1505 = vmul.f32 %v1447, %v1497
        %v1506 = vmul.f32 %v1448, %v1498
        %v1507 = vmul.f32 %v1449, %v1499
        %v1509 = vperm.slane %v1407, 0
        %v1511 = vmul.f32 %v1504, %v1509
        %v1512 = vmul.f32 %v1505, %v1509
        %v1513 = vmul.f32 %v1506, %v1509
        %v1514 = vmul.f32 %v1507, %v1509
        %v1516 = vperm.slane %v1408, 0
        %v1518 = vadd.f32 %v1511, %v1516
        %v1519 = vadd.f32 %v1512, %v1516
        %v1520 = vadd.f32 %v1513, %v1516
        %v1521 = vadd.f32 %v1514, %v1516
        %v1522 = vld [vmem:[#allocation10] sm:$0xff]
        %v1523 = vld [vmem:[#allocation10 + $0x8] sm:$0xff]
        %v1524 = vld [vmem:[#allocation10 + $0x10] sm:$0xff]
        %v1525 = vld [vmem:[#allocation10 + $0x18] sm:$0xff]
        %v1526 = vld [vmem:[%s14] sm:$0x1]
        %v1528 = vperm.slane %v1526, 0
        %v1534 = vrot.slane %v1518, 7
        %v1535 = vrot.slane %v1519, 6
        %v1536 = vsel %vm994, %v1535, %v1534
        %v1537 = vrot.slane %v1520, 5
        %v1538 = vsel %vm997, %v1537, %v1536
        %v1539 = vrot.slane %v1521, 4
        %v1540 = vsel %vm1000, %v1539, %v1538
        %v1541 = vsel %vm774, %v1540, 0
        %1543 = vmatpush.msra.mxu0 0.0
        %1544 = vmatpush.msra.mxu0 0.0
        %1545 = vmatpush.msra.mxu0 0.0
        %1546 = vmatpush.msra.mxu0 0.0
        %1547 = vmatpush.msra.mxu0 0.0
        %1548 = vmatpush.msra.mxu0 0.0
        %1549 = vmatpush.msra.mxu0 0.0
        %1550 = vmatpush.msra.mxu0 0.0
        %1551 = vmatpush.msra.mxu0 0.0
        %1552 = vmatpush.msra.mxu0 0.0
        %1553 = vmatpush.msra.mxu0 0.0
        %1554 = vmatpush.msra.mxu0 0.0
        %1555 = vmatpush.msra.mxu0 %v1525
        %1556 = vmatpush.msra.mxu0 %v1524
        %1557 = vmatpush.msra.mxu0 %v1523
        %1558 = vmatpush.msra.mxu0 %v1522
        %1559 = vmatmul.f32.gmra.mxu0 %v1541
        %v1560 = vpop.f32.mrf.mxu0
        %v1561 = vadd.f32 %v1528, %v1560
        %1562 = vdwg.mxu0
        %v1563 = vmax.f32 %v1561, 0.0
        %v1564 = vld [vmem:[%s15] sm:$0xff]
        %v1565 = vld [vmem:[%s15 + $0x8] sm:$0xff]
        %v1566 = vld [vmem:[%s15 + $0x10] sm:$0xff]
        %v1567 = vld [vmem:[%s15 + $0x18] sm:$0xff]
        %v1568 = vld [vmem:[%s15 + $0x20] sm:$0xff]
        %v1569 = vld [vmem:[%s15 + $0x28] sm:$0xff]
        %v1570 = vld [vmem:[%s15 + $0x30] sm:$0xff]
        %v1571 = vld [vmem:[%s15 + $0x38] sm:$0xff]
        %v1572 = vld [vmem:[%s16] sm:$0x1]
        %v1574 = vperm.slane %v1572, 0
        %vm1576 = vcmask 523264
        %v1578 = vsel %vm1576, %v1563, 0
        %1580 = vmatpush.msra.mxu0 0.0
        %1581 = vmatpush.msra.mxu0 0.0
        %1582 = vmatpush.msra.mxu0 0.0
        %1583 = vmatpush.msra.mxu0 0.0
        %1584 = vmatpush.msra.mxu0 0.0
        %1585 = vmatpush.msra.mxu0 0.0
        %1586 = vmatpush.msra.mxu0 0.0
        %1587 = vmatpush.msra.mxu0 0.0
        %1588 = vmatpush.msra.mxu0 %v1571
        %1589 = vmatpush.msra.mxu0 %v1570
        %1590 = vmatpush.msra.mxu0 %v1569
        %1591 = vmatpush.msra.mxu0 %v1568
        %1592 = vmatpush.msra.mxu0 %v1567
        %1593 = vmatpush.msra.mxu0 %v1566
        %1594 = vmatpush.msra.mxu0 %v1565
        %1595 = vmatpush.msra.mxu0 %v1564
        %1596 = vmatmul.f32.gmra.mxu0 %v1578
        %v1597 = vpop.f32.mrf.mxu0
        %v1598 = vadd.f32 %v1574, %v1597
        %1599 = vdwg.mxu0
        %v1601 = vrot.slane %v1598, 1
        %v1602 = vrot.slane %v1598, 2
        %v1603 = vrot.slane %v1598, 3
        %v1604 = vrot.slane %v1598, 4
        %v1609 = vadd.f32 %v1518, %v1601
        %v1610 = vadd.f32 %v1519, %v1602
        %v1611 = vadd.f32 %v1520, %v1603
        %v1612 = vadd.f32 %v1521, %v1604
        %v1613 = vld [vmem:[%s17] sm:$0x1]
        %v1614 = vld [vmem:[%s18] sm:$0x1]
        %v1619 = vrot.slane %v1610, 7
        %v1620 = vrot.slane %v1611, 6
        %v1621 = vsel %vm994, %v1620, %v1619
        %v1622 = vrot.slane %v1612, 5
        %v1623 = vsel %vm997, %v1622, %v1621
        %v1626 = vsel %vm1420, %v1609, 0.0
        %1627 = vadd.xlane.f32.xlu0 %v1626
        %v1628 = vpop.xlane.xlu0 %1627
        %v1629 = vsel %vm1424, %v1623, 0.0
        %1630 = vadd.xlane.f32.xlu0 %v1629
        %v1631 = vpop.xlane.xlu0 %1630
        %v1632 = vmul.f32 %v1628, %v1434
        %v1633 = vmul.f32 %v1631, %v1434
        %v1636 = vrot.slane %v1633, 1
        %v1637 = vrot.slane %v1633, 2
        %v1638 = vrot.slane %v1633, 3
        %v1643 = vsub.f32 %v1609, %v1632
        %v1644 = vsub.f32 %v1610, %v1636
        %v1645 = vsub.f32 %v1611, %v1637
        %v1646 = vsub.f32 %v1612, %v1638
        %v1647 = vmul.f32 %v1643, %v1643
        %v1648 = vmul.f32 %v1644, %v1644
        %v1649 = vmul.f32 %v1645, %v1645
        %v1650 = vmul.f32 %v1646, %v1646
        %v1655 = vrot.slane %v1648, 7
        %v1656 = vrot.slane %v1649, 6
        %v1657 = vsel %vm994, %v1656, %v1655
        %v1658 = vrot.slane %v1650, 5
        %v1659 = vsel %vm997, %v1658, %v1657
        %v1662 = vsel %vm1420, %v1647, 0.0
        %1663 = vadd.xlane.f32.xlu0 %v1662
        %v1664 = vpop.xlane.xlu0 %1663
        %v1665 = vsel %vm1424, %v1659, 0.0
        %1666 = vadd.xlane.f32.xlu0 %v1665
        %v1667 = vpop.xlane.xlu0 %1666
        %v1668 = vmul.f32 %v1664, %v1434
        %v1669 = vmul.f32 %v1667, %v1434
        %v1670 = vadd.f32 %v1668, 1e-05
        %v1671 = vadd.f32 %v1669, 1e-05
        %v1672 = vrsqrt.pop %v1670
        %v1673 = vmul.f32 %v1672, %v1670
        %v1674 = vmul.f32 %v1673, %v1672
        %v1675 = vmul.f32 0.5, %v1674
        %v1676 = vsub.f32 1.5, %v1675
        %v1677 = vmul.f32 %v1672, %v1676
        %vm1678 = vweird.f32 %v1670
        %vm1679 = vweird.f32 %v1672
        %vm1680 = vmor %vm1678, %vm1679
        %v1681 = vsel %vm1680, %v1672, %v1677
        %v1682 = vrsqrt.pop %v1671
        %v1683 = vmul.f32 %v1682, %v1671
        %v1684 = vmul.f32 %v1683, %v1682
        %v1685 = vmul.f32 0.5, %v1684
        %v1686 = vsub.f32 1.5, %v1685
        %v1687 = vmul.f32 %v1682, %v1686
        %vm1688 = vweird.f32 %v1671
        %vm1689 = vweird.f32 %v1682
        %vm1690 = vmor %vm1688, %vm1689
        %v1691 = vsel %vm1690, %v1682, %v1687
        %v1694 = vrot.slane %v1691, 1
        %v1695 = vrot.slane %v1691, 2
        %v1696 = vrot.slane %v1691, 3
        %v1701 = vmul.f32 %v1643, %v1681
        %v1702 = vmul.f32 %v1644, %v1694
        %v1703 = vmul.f32 %v1645, %v1695
        %v1704 = vmul.f32 %v1646, %v1696
        %v1706 = vperm.slane %v1613, 0
        %v1708 = vmul.f32 %v1701, %v1706
        %v1709 = vmul.f32 %v1702, %v1706
        %v1710 = vmul.f32 %v1703, %v1706
        %v1711 = vmul.f32 %v1704, %v1706
        %v1713 = vperm.slane %v1614, 0
        %v1715 = vadd.f32 %v1708, %v1713
        %v1716 = vadd.f32 %v1709, %v1713
        %v1717 = vadd.f32 %v1710, %v1713
        %v1718 = vadd.f32 %v1711, %v1713
        %v1723 = vrot.slane %v1716, 7
        %v1724 = vrot.slane %v1717, 6
        %v1725 = vsel %vm994, %v1724, %v1723
        %v1726 = vrot.slane %v1718, 5
        %v1727 = vsel %vm997, %v1726, %v1725
        %1730 = vst.msk [vmem:[%s678 - $0x7] sm:$0x80] %vm1420, %v1715
        %1731 = vst.msk [vmem:[%s678 + $0x1] sm:$0x7] %vm1424, %v1727
        %s1732 = sand.u32 %s448, 1
        %s1733 = scalar_lea.sflag [#allocation4], %s1732
        %s1734 = sand.u32 %s448, 1
        %s1735 = smul.addr %s1734, 4
        %s1736 = scalar_lea.vmem [#allocation11], %s1735
        // Predicated region
        $region117: #{tpu_custom_call.1} parent=95 // pred_check
          %p1737 = pneg %p458
        $region118: #{tpu_custom_call.1} parent=95 // pred_check_branch
          %1739 = sbr.rel (%p1737) target = $region120
        $region119: #{tpu_custom_call.1} parent=95 // pred_region
          %1741 = vsyncadd %s1733, 0
          %s1742 = smul.addr %s36, 4
          %s1743 = scalar_lea.hbm %s19, %s1742
          %s1745 = sshll.u32 %s1736, 4
          %s1746 = int_to_ptr.vmem [resolvable:$true] %s1745
          %s1747 = sshll.u32 %s1743, 4
          %s1748 = int_to_ptr.hbm [resolvable:$true] %s1747
          %1750 = dma.vmem_to_hbm [thread:$0]  %s1746, 64, %s1748, %s1733
        $region120: #{tpu_custom_call.1} parent=95 // pred_fallthru
          _
      $region96: #{tpu_custom_call.1} parent=5 // pred_fallthru
        _
      %p1751 = scmp.le.s32.totalorder 2, %s31
      // Predicated region
      $region121: #{tpu_custom_call.1} parent=5 // pred_check
        %p1752 = pneg %p1751
      $region122: #{tpu_custom_call.1} parent=5 // pred_check_branch
        %1754 = sbr.rel (%p1752) target = $region124
      $region123: #{tpu_custom_call.1} parent=5 // pred_region
        %s1755 = ssub.s32 %s31, 2
        // Predicated region
        $region125: #{tpu_custom_call.1} parent=123 // pred_check
          %p1756 = pneg %p464
        $region126: #{tpu_custom_call.1} parent=123 // pred_check_branch
          %1758 = sbr.rel (%p1756) target = $region128
        $region127: #{tpu_custom_call.1} parent=123 // pred_region
          %s1759 = sand.u32 %s449, 1
          %s1760 = scalar_lea.sflag [#allocation4], %s1759
          %s1761 = sand.u32 %s449, 1
          %s1762 = smul.addr %s1761, 4
          %s1763 = scalar_lea.vmem [#allocation11], %s1762
          %1765 = dma.done %s1760, 64
        $region128: #{tpu_custom_call.1} parent=123 // pred_fallthru
          _
      $region124: #{tpu_custom_call.1} parent=5 // pred_fallthru
        _
    $region6: #{tpu_custom_call.1} parent=1 // loop_footer
      %s35 = sadd.s32 1, %s31
    $region7: #{tpu_custom_call.1} parent=1 // loop_footer_branch
      %30 = sbr.rel target = $region3
    $region8: #{tpu_custom_call.1} parent=1 // loop_exit
      _
    %1766 = vsyncpa [#allocation3], 1
    %s1767 = scalar_lea.sflag [#allocation3], 1
    %1768 = vsyncpa %s1767, 1
    %1769 = vsyncpa [#allocation6], 1
    %1770 = vsyncpa [#allocation9], 1
    %1771 = vsyncpa [#allocation4], 1
    %s1772 = scalar_lea.sflag [#allocation4], 1
    %1773 = vsyncpa %s1772, 1

</llo_original>
